<compile_context>
chip_gen: v6e
topology: v6e:2x2x1
jax: 0.10.0
libtpu: 0.0.40
codegen_flags: <defaults>
</compile_context>

<pallas_src>
import functools

import jax
import jax.numpy as jnp
from jax.experimental import pallas as pl
from jax.experimental.pallas import tpu as pltpu


def _lan_encoder_kernel(*refs, BT, T, H, L):
    """Fused stacked-LSTM (L layers) + flatten + 2-layer MLP head.

    refs layout:
      refs[0]                    : x, time-major padded block (T, BT, E)
      refs[1 + 3*l .. +2]        : per-layer (w_ih^T (in,4H), w_hh^T (H,4H), bias (1,4H))
      refs[1+3L .. 1+3L+3]       : mlp_w1 (T*H,M), mlp_b1 (1,M), mlp_w2 (M,O), mlp_b2 (1,O)
      refs[-1]                   : output block (BT, O)
    """
    x_ref = refs[0]
    layer_refs = refs[1:1 + 3 * L]
    mw1_ref, mb1_ref, mw2_ref, mb2_ref = refs[1 + 3 * L:1 + 3 * L + 4]
    o_ref = refs[-1]
    f32 = jnp.float32

    # Hoist all weight loads out of the unrolled loops (plain aligned vlds).
    wihs = [layer_refs[3 * l + 0][...] for l in range(L)]
    whhs = [layer_refs[3 * l + 1][...] for l in range(L)]
    bs = [layer_refs[3 * l + 2][...] for l in range(L)]

    # Layer-0 input projection for every timestep, issued up front from aligned
    # (BT, E) tiles.  These T matmuls are independent of the recurrence, so they
    # pipeline through the MXU off the serial critical path.
    xp0 = [jnp.dot(x_ref[t].astype(f32), wihs[0], preferred_element_type=f32) + bs[0]
           for t in range(T)]                                  # each (BT, 4H)

    hs = [jnp.zeros((BT, H), f32) for _ in range(L)]
    cs = [jnp.zeros((BT, H), f32) for _ in range(L)]
    acc = jnp.zeros((BT, mw1_ref.shape[1]), f32)               # fused flatten + MLP-1

    def lstm_cell(gates, c):
        # Full-width activations on the (BT, 4H) gates vreg:
        #   sigmoid(z) = 0.5*tanh(z/2) + 0.5  (single EUP op, no exp + divide)
        sig = 0.5 * jnp.tanh(0.5 * gates) + 0.5                # i, f, o gates
        tnh = jnp.tanh(gates)                                  # g gate
        i_g = sig[:, 0 * H:1 * H]
        f_g = sig[:, 1 * H:2 * H]
        g_g = tnh[:, 2 * H:3 * H]
        o_g = sig[:, 3 * H:4 * H]
        c_new = f_g * c + i_g * g_g
        h_new = o_g * jnp.tanh(c_new)
        return h_new, c_new

    for t in range(T):                                         # static unroll: serial recurrence
        for l in range(L):
            if l == 0:
                gin = xp0[t]
            else:
                # Layer-l input projection computed incrementally from the fresh
                # lower-layer h_t (no inter-layer sequence buffer / concat).
                gin = jnp.dot(hs[l - 1], wihs[l], preferred_element_type=f32) + bs[l]
            gates = gin + jnp.dot(hs[l], whhs[l], preferred_element_type=f32)
            hs[l], cs[l] = lstm_cell(gates, cs[l])
        # Fused torch.flatten + first Linear: feat[:, t*H:(t+1)*H] @ W1 rows
        # (8-sublane-aligned row slice since H is a multiple of 8).
        acc = acc + jnp.dot(hs[L - 1], mw1_ref[t * H:(t + 1) * H, :],
                            preferred_element_type=f32)

    hid = jnp.maximum(acc + mb1_ref[...], 0.0)                 # ReLU
    out = jnp.dot(hid, mw2_ref[...], preferred_element_type=f32) + mb2_ref[...]
    o_ref[...] = out.astype(o_ref.dtype)                       # full (BT, O) unmasked store


def lan_encoder_forward(x, params):
    """x: (B, T, E) float32 -> (B, 128)."""
    B, T, E = x.shape
    layers = params["layers"]
    L = len(layers)
    H = layers[0]["whh"].shape[0]
    out_dim = params["mlp_w2"].shape[1]

    BT = 8                                        # one f32 sublane tile per batch block
    BP = ((B + BT - 1) // BT) * BT                # batch padded to a multiple of 8

    # Single fused prep copy (XLA fuses transpose+pad): time-major, batch padded.
    # Padded rows are zeros -> LSTM math stays finite; they are dropped at the end.
    x_tm = jnp.transpose(x, (1, 0, 2))            # (T, B, E)
    if BP != B:
        x_tm = jnp.pad(x_tm, ((0, 0), (0, BP - B), (0, 0)))

    inputs = [x_tm]
    for lyr in layers:
        inputs += [lyr["wih"], lyr["whh"], lyr["b"]]
    inputs += [params["mlp_w1"], params["mlp_b1"], params["mlp_w2"], params["mlp_b2"]]

    def _resident(a):
        # Whole array resident in VMEM; same block for every grid step (no re-DMA).
        nd = a.ndim
        return pl.BlockSpec(a.shape, lambda i, _nd=nd: (0,) * _nd)

    in_specs = ([pl.BlockSpec((T, BT, E), lambda i: (0, i, 0))]     # batch-tiled x
                + [_resident(a) for a in inputs[1:]])

    out = pl.pallas_call(
        functools.partial(_lan_encoder_kernel, BT=BT, T=T, H=H, L=L),
        out_shape=jax.ShapeDtypeStruct((BP, out_dim), jnp.float32),
        grid=(BP // BT,),                           # batch-tile grid; length 1 at demo size
        in_specs=in_specs,
        out_specs=pl.BlockSpec((BT, out_dim), lambda i: (i, 0)),
        compiler_params=pltpu.CompilerParams(
            dimension_semantics=("parallel",)),     # independent batch tiles (v7x megacore)
    )(*inputs)
    return out[:B]


# ----------------------------------------------------------------------------
# Deterministic synthetic parameters (PyTorch-style uniform init), stored in
# the kernel's layouts: w_ih^T (in, 4H), w_hh^T (H, 4H), bias = b_ih + b_hh,
# gate column order (i, f, g, o); Linear weights transposed to (in, out).
# ----------------------------------------------------------------------------
def init_params(key, *, seq_len=4, hidden_size=32, num_layers=2, embedding_dim=50):
    H = hidden_size
    keys = iter(jax.random.split(key, 4 * num_layers + 4))

    def uni(k, shape, fan):
        bound = fan ** -0.5
        return jax.random.uniform(k, shape, jnp.float32, -bound, bound)

    layers = []
    in_dim = embedding_dim
    for _ in range(num_layers):
        wih = uni(next(keys), (in_dim, 4 * H), H)
        whh = uni(next(keys), (H, 4 * H), H)
        b_ih = uni(next(keys), (4 * H,), H)
        b_hh = uni(next(keys), (4 * H,), H)
        layers.append({"wih": wih, "whh": whh, "b": (b_ih + b_hh).reshape(1, 4 * H)})
        in_dim = H

    mlp_in = seq_len * H
    params = {
        "layers": layers,
        "mlp_w1": uni(next(keys), (mlp_in, 128), mlp_in),
        "mlp_b1": uni(next(keys), (128,), mlp_in).reshape(1, 128),
        "mlp_w2": uni(next(keys), (128, 128), 128),
        "mlp_b2": uni(next(keys), (128,), 128).reshape(1, 128),
    }
    return params


if __name__ == "__main__":
    key = jax.random.PRNGKey(0)
    k_params, k_x = jax.random.split(key)

    seq_len, hidden_size, num_layers, embedding_dim = 4, 32, 2, 50
    params = init_params(k_params, seq_len=seq_len, hidden_size=hidden_size,
                         num_layers=num_layers, embedding_dim=embedding_dim)

    B = 2
    x = jax.random.normal(k_x, (B, seq_len, embedding_dim), jnp.float32)

    fwd = jax.jit(lan_encoder_forward)
    out = jax.block_until_ready(fwd(x, params))

    assert out.shape == (B, 128), out.shape
    assert out.dtype == jnp.float32
    assert bool(jnp.all(jnp.isfinite(out)))
    print("KERNEL_OK")
</pallas_src>

<mosaic_0001>
module attributes {stable_mosaic.version = 11 : i64} {
  func.func @_lan_encoder_kernel(%arg0: i32, %arg1: memref<4x8x50xf32, #tpu.memory_space<vmem>>, %arg2: memref<50x128xf32, #tpu.memory_space<vmem>>, %arg3: memref<32x128xf32, #tpu.memory_space<vmem>>, %arg4: memref<1x128xf32, #tpu.memory_space<vmem>>, %arg5: memref<32x128xf32, #tpu.memory_space<vmem>>, %arg6: memref<32x128xf32, #tpu.memory_space<vmem>>, %arg7: memref<1x128xf32, #tpu.memory_space<vmem>>, %arg8: memref<128x128xf32, #tpu.memory_space<vmem>>, %arg9: memref<1x128xf32, #tpu.memory_space<vmem>>, %arg10: memref<128x128xf32, #tpu.memory_space<vmem>>, %arg11: memref<1x128xf32, #tpu.memory_space<vmem>>, %arg12: memref<8x128xf32, #tpu.memory_space<vmem>>) attributes {dimension_semantics = [#tpu.dimension_semantics<parallel>], iteration_bounds = array<i64: 1>, scalar_prefetch = 0 : i64, scratch_operands = 0 : i64, tpu.core_type = #tpu.core_type<tc>, window_params = [{transform_indices = @transform_0, window_bounds = array<i64: 4, 8, 50>}, {pipeline_mode = #tpu.pipeline_mode<synchronous>, transform_indices = @transform_1, window_bounds = array<i64: 50, 128>}, {pipeline_mode = #tpu.pipeline_mode<synchronous>, transform_indices = @transform_2, window_bounds = array<i64: 32, 128>}, {pipeline_mode = #tpu.pipeline_mode<synchronous>, transform_indices = @transform_3, window_bounds = array<i64: 1, 128>}, {pipeline_mode = #tpu.pipeline_mode<synchronous>, transform_indices = @transform_4, window_bounds = array<i64: 32, 128>}, {pipeline_mode = #tpu.pipeline_mode<synchronous>, transform_indices = @transform_5, window_bounds = array<i64: 32, 128>}, {pipeline_mode = #tpu.pipeline_mode<synchronous>, transform_indices = @transform_6, window_bounds = array<i64: 1, 128>}, {pipeline_mode = #tpu.pipeline_mode<synchronous>, transform_indices = @transform_7, window_bounds = array<i64: 128, 128>}, {pipeline_mode = #tpu.pipeline_mode<synchronous>, transform_indices = @transform_8, window_bounds = array<i64: 1, 128>}, {pipeline_mode = #tpu.pipeline_mode<synchronous>, transform_indices = @transform_9, window_bounds = array<i64: 128, 128>}, {pipeline_mode = #tpu.pipeline_mode<synchronous>, transform_indices = @transform_10, window_bounds = array<i64: 1, 128>}, {transform_indices = @transform_11, window_bounds = array<i64: 8, 128>}]} {
    %c0 = arith.constant 0 : index
    %c0_0 = arith.constant 0 : index
    %0 = vector.load %arg2[%c0, %c0_0] : memref<50x128xf32, #tpu.memory_space<vmem>>, vector<50x128xf32>
    %c0_1 = arith.constant 0 : index
    %c0_2 = arith.constant 0 : index
    %1 = vector.load %arg5[%c0_1, %c0_2] : memref<32x128xf32, #tpu.memory_space<vmem>>, vector<32x128xf32>
    %c0_3 = arith.constant 0 : index
    %c0_4 = arith.constant 0 : index
    %2 = vector.load %arg3[%c0_3, %c0_4] : memref<32x128xf32, #tpu.memory_space<vmem>>, vector<32x128xf32>
    %c0_5 = arith.constant 0 : index
    %c0_6 = arith.constant 0 : index
    %3 = vector.load %arg6[%c0_5, %c0_6] : memref<32x128xf32, #tpu.memory_space<vmem>>, vector<32x128xf32>
    %c0_7 = arith.constant 0 : index
    %c0_8 = arith.constant 0 : index
    %4 = vector.load %arg4[%c0_7, %c0_8] : memref<1x128xf32, #tpu.memory_space<vmem>>, vector<1x128xf32>
    %c0_9 = arith.constant 0 : index
    %c0_10 = arith.constant 0 : index
    %5 = vector.load %arg7[%c0_9, %c0_10] : memref<1x128xf32, #tpu.memory_space<vmem>>, vector<1x128xf32>
    %c0_11 = arith.constant 0 : index
    %c0_12 = arith.constant 0 : index
    %c0_13 = arith.constant 0 : index
    %6 = vector.load %arg1[%c0_11, %c0_12, %c0_13] : memref<4x8x50xf32, #tpu.memory_space<vmem>>, vector<1x8x50xf32>
    %7 = vector.shape_cast %6 : vector<1x8x50xf32> to vector<8x50xf32>
    %cst = arith.constant dense<0.000000e+00> : vector<8x128xf32>
    %8 = tpu.matmul %7, %0, %cst {dimension_numbers = #tpu.dot_dimension_numbers<[1], [0], [0], [1], [0, 0, 1, 1], [], []>} : vector<8x50xf32>, vector<50x128xf32>, vector<8x128xf32> -> vector<8x128xf32>
    %9 = vector.broadcast %4 : vector<1x128xf32> to vector<8x128xf32>
    %10 = arith.addf %8, %9 : vector<8x128xf32>
    %c1 = arith.constant 1 : index
    %c0_14 = arith.constant 0 : index
    %c0_15 = arith.constant 0 : index
    %11 = vector.load %arg1[%c1, %c0_14, %c0_15] : memref<4x8x50xf32, #tpu.memory_space<vmem>>, vector<1x8x50xf32>
    %12 = vector.shape_cast %11 : vector<1x8x50xf32> to vector<8x50xf32>
    %cst_16 = arith.constant dense<0.000000e+00> : vector<8x128xf32>
    %13 = tpu.matmul %12, %0, %cst_16 {dimension_numbers = #tpu.dot_dimension_numbers<[1], [0], [0], [1], [0, 0, 1, 1], [], []>} : vector<8x50xf32>, vector<50x128xf32>, vector<8x128xf32> -> vector<8x128xf32>
    %14 = vector.broadcast %4 : vector<1x128xf32> to vector<8x128xf32>
    %15 = arith.addf %13, %14 : vector<8x128xf32>
    %c2 = arith.constant 2 : index
    %c0_17 = arith.constant 0 : index
    %c0_18 = arith.constant 0 : index
    %16 = vector.load %arg1[%c2, %c0_17, %c0_18] : memref<4x8x50xf32, #tpu.memory_space<vmem>>, vector<1x8x50xf32>
    %17 = vector.shape_cast %16 : vector<1x8x50xf32> to vector<8x50xf32>
    %cst_19 = arith.constant dense<0.000000e+00> : vector<8x128xf32>
    %18 = tpu.matmul %17, %0, %cst_19 {dimension_numbers = #tpu.dot_dimension_numbers<[1], [0], [0], [1], [0, 0, 1, 1], [], []>} : vector<8x50xf32>, vector<50x128xf32>, vector<8x128xf32> -> vector<8x128xf32>
    %19 = vector.broadcast %4 : vector<1x128xf32> to vector<8x128xf32>
    %20 = arith.addf %18, %19 : vector<8x128xf32>
    %c3 = arith.constant 3 : index
    %c0_20 = arith.constant 0 : index
    %c0_21 = arith.constant 0 : index
    %21 = vector.load %arg1[%c3, %c0_20, %c0_21] : memref<4x8x50xf32, #tpu.memory_space<vmem>>, vector<1x8x50xf32>
    %22 = vector.shape_cast %21 : vector<1x8x50xf32> to vector<8x50xf32>
    %cst_22 = arith.constant dense<0.000000e+00> : vector<8x128xf32>
    %23 = tpu.matmul %22, %0, %cst_22 {dimension_numbers = #tpu.dot_dimension_numbers<[1], [0], [0], [1], [0, 0, 1, 1], [], []>} : vector<8x50xf32>, vector<50x128xf32>, vector<8x128xf32> -> vector<8x128xf32>
    %24 = vector.broadcast %4 : vector<1x128xf32> to vector<8x128xf32>
    %25 = arith.addf %23, %24 : vector<8x128xf32>
    %cst_23 = arith.constant 0.000000e+00 : f32
    %26 = vector.broadcast %cst_23 : f32 to vector<8x32xf32>
    %cst_24 = arith.constant 0.000000e+00 : f32
    %27 = vector.broadcast %cst_24 : f32 to vector<8x32xf32>
    %cst_25 = arith.constant 0.000000e+00 : f32
    %28 = vector.broadcast %cst_25 : f32 to vector<8x32xf32>
    %cst_26 = arith.constant 0.000000e+00 : f32
    %29 = vector.broadcast %cst_26 : f32 to vector<8x32xf32>
    %cst_27 = arith.constant 0.000000e+00 : f32
    %30 = vector.broadcast %cst_27 : f32 to vector<8x128xf32>
    %cst_28 = arith.constant dense<0.000000e+00> : vector<8x128xf32>
    %31 = tpu.matmul %26, %2, %cst_28 {dimension_numbers = #tpu.dot_dimension_numbers<[1], [0], [0], [1], [0, 0, 1, 1], [], []>} : vector<8x32xf32>, vector<32x128xf32>, vector<8x128xf32> -> vector<8x128xf32>
    %32 = arith.addf %10, %31 : vector<8x128xf32>
    %cst_29 = arith.constant 5.000000e-01 : f32
    %33 = vector.broadcast %cst_29 : f32 to vector<8x128xf32>
    %34 = arith.mulf %33, %32 : vector<8x128xf32>
    %35 = math.tanh %34 : vector<8x128xf32>
    %cst_30 = arith.constant 5.000000e-01 : f32
    %36 = vector.broadcast %cst_30 : f32 to vector<8x128xf32>
    %37 = arith.mulf %36, %35 : vector<8x128xf32>
    %cst_31 = arith.constant 5.000000e-01 : f32
    %38 = vector.broadcast %cst_31 : f32 to vector<8x128xf32>
    %39 = arith.addf %37, %38 : vector<8x128xf32>
    %40 = math.tanh %32 : vector<8x128xf32>
    %41 = vector.extract_strided_slice %39 {offsets = [0, 0], sizes = [8, 32], strides = [1, 1]} : vector<8x128xf32> to vector<8x32xf32>
    %42 = vector.extract_strided_slice %39 {offsets = [0, 32], sizes = [8, 32], strides = [1, 1]} : vector<8x128xf32> to vector<8x32xf32>
    %43 = vector.extract_strided_slice %40 {offsets = [0, 64], sizes = [8, 32], strides = [1, 1]} : vector<8x128xf32> to vector<8x32xf32>
    %44 = vector.extract_strided_slice %39 {offsets = [0, 96], sizes = [8, 32], strides = [1, 1]} : vector<8x128xf32> to vector<8x32xf32>
    %45 = arith.mulf %42, %28 : vector<8x32xf32>
    %46 = arith.mulf %41, %43 : vector<8x32xf32>
    %47 = arith.addf %45, %46 : vector<8x32xf32>
    %48 = math.tanh %47 : vector<8x32xf32>
    %49 = arith.mulf %44, %48 : vector<8x32xf32>
    %cst_32 = arith.constant dense<0.000000e+00> : vector<8x128xf32>
    %50 = tpu.matmul %49, %1, %cst_32 {dimension_numbers = #tpu.dot_dimension_numbers<[1], [0], [0], [1], [0, 0, 1, 1], [], []>} : vector<8x32xf32>, vector<32x128xf32>, vector<8x128xf32> -> vector<8x128xf32>
    %51 = vector.broadcast %5 : vector<1x128xf32> to vector<8x128xf32>
    %52 = arith.addf %50, %51 : vector<8x128xf32>
    %cst_33 = arith.constant dense<0.000000e+00> : vector<8x128xf32>
    %53 = tpu.matmul %27, %3, %cst_33 {dimension_numbers = #tpu.dot_dimension_numbers<[1], [0], [0], [1], [0, 0, 1, 1], [], []>} : vector<8x32xf32>, vector<32x128xf32>, vector<8x128xf32> -> vector<8x128xf32>
    %54 = arith.addf %52, %53 : vector<8x128xf32>
    %cst_34 = arith.constant 5.000000e-01 : f32
    %55 = vector.broadcast %cst_34 : f32 to vector<8x128xf32>
    %56 = arith.mulf %55, %54 : vector<8x128xf32>
    %57 = math.tanh %56 : vector<8x128xf32>
    %cst_35 = arith.constant 5.000000e-01 : f32
    %58 = vector.broadcast %cst_35 : f32 to vector<8x128xf32>
    %59 = arith.mulf %58, %57 : vector<8x128xf32>
    %cst_36 = arith.constant 5.000000e-01 : f32
    %60 = vector.broadcast %cst_36 : f32 to vector<8x128xf32>
    %61 = arith.addf %59, %60 : vector<8x128xf32>
    %62 = math.tanh %54 : vector<8x128xf32>
    %63 = vector.extract_strided_slice %61 {offsets = [0, 0], sizes = [8, 32], strides = [1, 1]} : vector<8x128xf32> to vector<8x32xf32>
    %64 = vector.extract_strided_slice %61 {offsets = [0, 32], sizes = [8, 32], strides = [1, 1]} : vector<8x128xf32> to vector<8x32xf32>
    %65 = vector.extract_strided_slice %62 {offsets = [0, 64], sizes = [8, 32], strides = [1, 1]} : vector<8x128xf32> to vector<8x32xf32>
    %66 = vector.extract_strided_slice %61 {offsets = [0, 96], sizes = [8, 32], strides = [1, 1]} : vector<8x128xf32> to vector<8x32xf32>
    %67 = arith.mulf %64, %29 : vector<8x32xf32>
    %68 = arith.mulf %63, %65 : vector<8x32xf32>
    %69 = arith.addf %67, %68 : vector<8x32xf32>
    %70 = math.tanh %69 : vector<8x32xf32>
    %71 = arith.mulf %66, %70 : vector<8x32xf32>
    %c0_37 = arith.constant 0 : index
    %c0_38 = arith.constant 0 : index
    %72 = vector.load %arg8[%c0_37, %c0_38] : memref<128x128xf32, #tpu.memory_space<vmem>>, vector<32x128xf32>
    %cst_39 = arith.constant dense<0.000000e+00> : vector<8x128xf32>
    %73 = tpu.matmul %71, %72, %cst_39 {dimension_numbers = #tpu.dot_dimension_numbers<[1], [0], [0], [1], [0, 0, 1, 1], [], []>} : vector<8x32xf32>, vector<32x128xf32>, vector<8x128xf32> -> vector<8x128xf32>
    %74 = arith.addf %30, %73 : vector<8x128xf32>
    %cst_40 = arith.constant dense<0.000000e+00> : vector<8x128xf32>
    %75 = tpu.matmul %49, %2, %cst_40 {dimension_numbers = #tpu.dot_dimension_numbers<[1], [0], [0], [1], [0, 0, 1, 1], [], []>} : vector<8x32xf32>, vector<32x128xf32>, vector<8x128xf32> -> vector<8x128xf32>
    %76 = arith.addf %15, %75 : vector<8x128xf32>
    %cst_41 = arith.constant 5.000000e-01 : f32
    %77 = vector.broadcast %cst_41 : f32 to vector<8x128xf32>
    %78 = arith.mulf %77, %76 : vector<8x128xf32>
    %79 = math.tanh %78 : vector<8x128xf32>
    %cst_42 = arith.constant 5.000000e-01 : f32
    %80 = vector.broadcast %cst_42 : f32 to vector<8x128xf32>
    %81 = arith.mulf %80, %79 : vector<8x128xf32>
    %cst_43 = arith.constant 5.000000e-01 : f32
    %82 = vector.broadcast %cst_43 : f32 to vector<8x128xf32>
    %83 = arith.addf %81, %82 : vector<8x128xf32>
    %84 = math.tanh %76 : vector<8x128xf32>
    %85 = vector.extract_strided_slice %83 {offsets = [0, 0], sizes = [8, 32], strides = [1, 1]} : vector<8x128xf32> to vector<8x32xf32>
    %86 = vector.extract_strided_slice %83 {offsets = [0, 32], sizes = [8, 32], strides = [1, 1]} : vector<8x128xf32> to vector<8x32xf32>
    %87 = vector.extract_strided_slice %84 {offsets = [0, 64], sizes = [8, 32], strides = [1, 1]} : vector<8x128xf32> to vector<8x32xf32>
    %88 = vector.extract_strided_slice %83 {offsets = [0, 96], sizes = [8, 32], strides = [1, 1]} : vector<8x128xf32> to vector<8x32xf32>
    %89 = arith.mulf %86, %47 : vector<8x32xf32>
    %90 = arith.mulf %85, %87 : vector<8x32xf32>
    %91 = arith.addf %89, %90 : vector<8x32xf32>
    %92 = math.tanh %91 : vector<8x32xf32>
    %93 = arith.mulf %88, %92 : vector<8x32xf32>
    %cst_44 = arith.constant dense<0.000000e+00> : vector<8x128xf32>
    %94 = tpu.matmul %93, %1, %cst_44 {dimension_numbers = #tpu.dot_dimension_numbers<[1], [0], [0], [1], [0, 0, 1, 1], [], []>} : vector<8x32xf32>, vector<32x128xf32>, vector<8x128xf32> -> vector<8x128xf32>
    %95 = vector.broadcast %5 : vector<1x128xf32> to vector<8x128xf32>
    %96 = arith.addf %94, %95 : vector<8x128xf32>
    %cst_45 = arith.constant dense<0.000000e+00> : vector<8x128xf32>
    %97 = tpu.matmul %71, %3, %cst_45 {dimension_numbers = #tpu.dot_dimension_numbers<[1], [0], [0], [1], [0, 0, 1, 1], [], []>} : vector<8x32xf32>, vector<32x128xf32>, vector<8x128xf32> -> vector<8x128xf32>
    %98 = arith.addf %96, %97 : vector<8x128xf32>
    %cst_46 = arith.constant 5.000000e-01 : f32
    %99 = vector.broadcast %cst_46 : f32 to vector<8x128xf32>
    %100 = arith.mulf %99, %98 : vector<8x128xf32>
    %101 = math.tanh %100 : vector<8x128xf32>
    %cst_47 = arith.constant 5.000000e-01 : f32
    %102 = vector.broadcast %cst_47 : f32 to vector<8x128xf32>
    %103 = arith.mulf %102, %101 : vector<8x128xf32>
    %cst_48 = arith.constant 5.000000e-01 : f32
    %104 = vector.broadcast %cst_48 : f32 to vector<8x128xf32>
    %105 = arith.addf %103, %104 : vector<8x128xf32>
    %106 = math.tanh %98 : vector<8x128xf32>
    %107 = vector.extract_strided_slice %105 {offsets = [0, 0], sizes = [8, 32], strides = [1, 1]} : vector<8x128xf32> to vector<8x32xf32>
    %108 = vector.extract_strided_slice %105 {offsets = [0, 32], sizes = [8, 32], strides = [1, 1]} : vector<8x128xf32> to vector<8x32xf32>
    %109 = vector.extract_strided_slice %106 {offsets = [0, 64], sizes = [8, 32], strides = [1, 1]} : vector<8x128xf32> to vector<8x32xf32>
    %110 = vector.extract_strided_slice %105 {offsets = [0, 96], sizes = [8, 32], strides = [1, 1]} : vector<8x128xf32> to vector<8x32xf32>
    %111 = arith.mulf %108, %69 : vector<8x32xf32>
    %112 = arith.mulf %107, %109 : vector<8x32xf32>
    %113 = arith.addf %111, %112 : vector<8x32xf32>
    %114 = math.tanh %113 : vector<8x32xf32>
    %115 = arith.mulf %110, %114 : vector<8x32xf32>
    %c32 = arith.constant 32 : index
    %c0_49 = arith.constant 0 : index
    %116 = vector.load %arg8[%c32, %c0_49] : memref<128x128xf32, #tpu.memory_space<vmem>>, vector<32x128xf32>
    %cst_50 = arith.constant dense<0.000000e+00> : vector<8x128xf32>
    %117 = tpu.matmul %115, %116, %cst_50 {dimension_numbers = #tpu.dot_dimension_numbers<[1], [0], [0], [1], [0, 0, 1, 1], [], []>} : vector<8x32xf32>, vector<32x128xf32>, vector<8x128xf32> -> vector<8x128xf32>
    %118 = arith.addf %74, %117 : vector<8x128xf32>
    %cst_51 = arith.constant dense<0.000000e+00> : vector<8x128xf32>
    %119 = tpu.matmul %93, %2, %cst_51 {dimension_numbers = #tpu.dot_dimension_numbers<[1], [0], [0], [1], [0, 0, 1, 1], [], []>} : vector<8x32xf32>, vector<32x128xf32>, vector<8x128xf32> -> vector<8x128xf32>
    %120 = arith.addf %20, %119 : vector<8x128xf32>
    %cst_52 = arith.constant 5.000000e-01 : f32
    %121 = vector.broadcast %cst_52 : f32 to vector<8x128xf32>
    %122 = arith.mulf %121, %120 : vector<8x128xf32>
    %123 = math.tanh %122 : vector<8x128xf32>
    %cst_53 = arith.constant 5.000000e-01 : f32
    %124 = vector.broadcast %cst_53 : f32 to vector<8x128xf32>
    %125 = arith.mulf %124, %123 : vector<8x128xf32>
    %cst_54 = arith.constant 5.000000e-01 : f32
    %126 = vector.broadcast %cst_54 : f32 to vector<8x128xf32>
    %127 = arith.addf %125, %126 : vector<8x128xf32>
    %128 = math.tanh %120 : vector<8x128xf32>
    %129 = vector.extract_strided_slice %127 {offsets = [0, 0], sizes = [8, 32], strides = [1, 1]} : vector<8x128xf32> to vector<8x32xf32>
    %130 = vector.extract_strided_slice %127 {offsets = [0, 32], sizes = [8, 32], strides = [1, 1]} : vector<8x128xf32> to vector<8x32xf32>
    %131 = vector.extract_strided_slice %128 {offsets = [0, 64], sizes = [8, 32], strides = [1, 1]} : vector<8x128xf32> to vector<8x32xf32>
    %132 = vector.extract_strided_slice %127 {offsets = [0, 96], sizes = [8, 32], strides = [1, 1]} : vector<8x128xf32> to vector<8x32xf32>
    %133 = arith.mulf %130, %91 : vector<8x32xf32>
    %134 = arith.mulf %129, %131 : vector<8x32xf32>
    %135 = arith.addf %133, %134 : vector<8x32xf32>
    %136 = math.tanh %135 : vector<8x32xf32>
    %137 = arith.mulf %132, %136 : vector<8x32xf32>
    %cst_55 = arith.constant dense<0.000000e+00> : vector<8x128xf32>
    %138 = tpu.matmul %137, %1, %cst_55 {dimension_numbers = #tpu.dot_dimension_numbers<[1], [0], [0], [1], [0, 0, 1, 1], [], []>} : vector<8x32xf32>, vector<32x128xf32>, vector<8x128xf32> -> vector<8x128xf32>
    %139 = vector.broadcast %5 : vector<1x128xf32> to vector<8x128xf32>
    %140 = arith.addf %138, %139 : vector<8x128xf32>
    %cst_56 = arith.constant dense<0.000000e+00> : vector<8x128xf32>
    %141 = tpu.matmul %115, %3, %cst_56 {dimension_numbers = #tpu.dot_dimension_numbers<[1], [0], [0], [1], [0, 0, 1, 1], [], []>} : vector<8x32xf32>, vector<32x128xf32>, vector<8x128xf32> -> vector<8x128xf32>
    %142 = arith.addf %140, %141 : vector<8x128xf32>
    %cst_57 = arith.constant 5.000000e-01 : f32
    %143 = vector.broadcast %cst_57 : f32 to vector<8x128xf32>
    %144 = arith.mulf %143, %142 : vector<8x128xf32>
    %145 = math.tanh %144 : vector<8x128xf32>
    %cst_58 = arith.constant 5.000000e-01 : f32
    %146 = vector.broadcast %cst_58 : f32 to vector<8x128xf32>
    %147 = arith.mulf %146, %145 : vector<8x128xf32>
    %cst_59 = arith.constant 5.000000e-01 : f32
    %148 = vector.broadcast %cst_59 : f32 to vector<8x128xf32>
    %149 = arith.addf %147, %148 : vector<8x128xf32>
    %150 = math.tanh %142 : vector<8x128xf32>
    %151 = vector.extract_strided_slice %149 {offsets = [0, 0], sizes = [8, 32], strides = [1, 1]} : vector<8x128xf32> to vector<8x32xf32>
    %152 = vector.extract_strided_slice %149 {offsets = [0, 32], sizes = [8, 32], strides = [1, 1]} : vector<8x128xf32> to vector<8x32xf32>
    %153 = vector.extract_strided_slice %150 {offsets = [0, 64], sizes = [8, 32], strides = [1, 1]} : vector<8x128xf32> to vector<8x32xf32>
    %154 = vector.extract_strided_slice %149 {offsets = [0, 96], sizes = [8, 32], strides = [1, 1]} : vector<8x128xf32> to vector<8x32xf32>
    %155 = arith.mulf %152, %113 : vector<8x32xf32>
    %156 = arith.mulf %151, %153 : vector<8x32xf32>
    %157 = arith.addf %155, %156 : vector<8x32xf32>
    %158 = math.tanh %157 : vector<8x32xf32>
    %159 = arith.mulf %154, %158 : vector<8x32xf32>
    %c64 = arith.constant 64 : index
    %c0_60 = arith.constant 0 : index
    %160 = vector.load %arg8[%c64, %c0_60] : memref<128x128xf32, #tpu.memory_space<vmem>>, vector<32x128xf32>
    %cst_61 = arith.constant dense<0.000000e+00> : vector<8x128xf32>
    %161 = tpu.matmul %159, %160, %cst_61 {dimension_numbers = #tpu.dot_dimension_numbers<[1], [0], [0], [1], [0, 0, 1, 1], [], []>} : vector<8x32xf32>, vector<32x128xf32>, vector<8x128xf32> -> vector<8x128xf32>
    %162 = arith.addf %118, %161 : vector<8x128xf32>
    %cst_62 = arith.constant dense<0.000000e+00> : vector<8x128xf32>
    %163 = tpu.matmul %137, %2, %cst_62 {dimension_numbers = #tpu.dot_dimension_numbers<[1], [0], [0], [1], [0, 0, 1, 1], [], []>} : vector<8x32xf32>, vector<32x128xf32>, vector<8x128xf32> -> vector<8x128xf32>
    %164 = arith.addf %25, %163 : vector<8x128xf32>
    %cst_63 = arith.constant 5.000000e-01 : f32
    %165 = vector.broadcast %cst_63 : f32 to vector<8x128xf32>
    %166 = arith.mulf %165, %164 : vector<8x128xf32>
    %167 = math.tanh %166 : vector<8x128xf32>
    %cst_64 = arith.constant 5.000000e-01 : f32
    %168 = vector.broadcast %cst_64 : f32 to vector<8x128xf32>
    %169 = arith.mulf %168, %167 : vector<8x128xf32>
    %cst_65 = arith.constant 5.000000e-01 : f32
    %170 = vector.broadcast %cst_65 : f32 to vector<8x128xf32>
    %171 = arith.addf %169, %170 : vector<8x128xf32>
    %172 = math.tanh %164 : vector<8x128xf32>
    %173 = vector.extract_strided_slice %171 {offsets = [0, 0], sizes = [8, 32], strides = [1, 1]} : vector<8x128xf32> to vector<8x32xf32>
    %174 = vector.extract_strided_slice %171 {offsets = [0, 32], sizes = [8, 32], strides = [1, 1]} : vector<8x128xf32> to vector<8x32xf32>
    %175 = vector.extract_strided_slice %172 {offsets = [0, 64], sizes = [8, 32], strides = [1, 1]} : vector<8x128xf32> to vector<8x32xf32>
    %176 = vector.extract_strided_slice %171 {offsets = [0, 96], sizes = [8, 32], strides = [1, 1]} : vector<8x128xf32> to vector<8x32xf32>
    %177 = arith.mulf %174, %135 : vector<8x32xf32>
    %178 = arith.mulf %173, %175 : vector<8x32xf32>
    %179 = arith.addf %177, %178 : vector<8x32xf32>
    %180 = math.tanh %179 : vector<8x32xf32>
    %181 = arith.mulf %176, %180 : vector<8x32xf32>
    %cst_66 = arith.constant dense<0.000000e+00> : vector<8x128xf32>
    %182 = tpu.matmul %181, %1, %cst_66 {dimension_numbers = #tpu.dot_dimension_numbers<[1], [0], [0], [1], [0, 0, 1, 1], [], []>} : vector<8x32xf32>, vector<32x128xf32>, vector<8x128xf32> -> vector<8x128xf32>
    %183 = vector.broadcast %5 : vector<1x128xf32> to vector<8x128xf32>
    %184 = arith.addf %182, %183 : vector<8x128xf32>
    %cst_67 = arith.constant dense<0.000000e+00> : vector<8x128xf32>
    %185 = tpu.matmul %159, %3, %cst_67 {dimension_numbers = #tpu.dot_dimension_numbers<[1], [0], [0], [1], [0, 0, 1, 1], [], []>} : vector<8x32xf32>, vector<32x128xf32>, vector<8x128xf32> -> vector<8x128xf32>
    %186 = arith.addf %184, %185 : vector<8x128xf32>
    %cst_68 = arith.constant 5.000000e-01 : f32
    %187 = vector.broadcast %cst_68 : f32 to vector<8x128xf32>
    %188 = arith.mulf %187, %186 : vector<8x128xf32>
    %189 = math.tanh %188 : vector<8x128xf32>
    %cst_69 = arith.constant 5.000000e-01 : f32
    %190 = vector.broadcast %cst_69 : f32 to vector<8x128xf32>
    %191 = arith.mulf %190, %189 : vector<8x128xf32>
    %cst_70 = arith.constant 5.000000e-01 : f32
    %192 = vector.broadcast %cst_70 : f32 to vector<8x128xf32>
    %193 = arith.addf %191, %192 : vector<8x128xf32>
    %194 = math.tanh %186 : vector<8x128xf32>
    %195 = vector.extract_strided_slice %193 {offsets = [0, 0], sizes = [8, 32], strides = [1, 1]} : vector<8x128xf32> to vector<8x32xf32>
    %196 = vector.extract_strided_slice %193 {offsets = [0, 32], sizes = [8, 32], strides = [1, 1]} : vector<8x128xf32> to vector<8x32xf32>
    %197 = vector.extract_strided_slice %194 {offsets = [0, 64], sizes = [8, 32], strides = [1, 1]} : vector<8x128xf32> to vector<8x32xf32>
    %198 = vector.extract_strided_slice %193 {offsets = [0, 96], sizes = [8, 32], strides = [1, 1]} : vector<8x128xf32> to vector<8x32xf32>
    %199 = arith.mulf %196, %157 : vector<8x32xf32>
    %200 = arith.mulf %195, %197 : vector<8x32xf32>
    %201 = arith.addf %199, %200 : vector<8x32xf32>
    %202 = math.tanh %201 : vector<8x32xf32>
    %203 = arith.mulf %198, %202 : vector<8x32xf32>
    %c96 = arith.constant 96 : index
    %c0_71 = arith.constant 0 : index
    %204 = vector.load %arg8[%c96, %c0_71] : memref<128x128xf32, #tpu.memory_space<vmem>>, vector<32x128xf32>
    %cst_72 = arith.constant dense<0.000000e+00> : vector<8x128xf32>
    %205 = tpu.matmul %203, %204, %cst_72 {dimension_numbers = #tpu.dot_dimension_numbers<[1], [0], [0], [1], [0, 0, 1, 1], [], []>} : vector<8x32xf32>, vector<32x128xf32>, vector<8x128xf32> -> vector<8x128xf32>
    %206 = arith.addf %162, %205 : vector<8x128xf32>
    %c0_73 = arith.constant 0 : index
    %c0_74 = arith.constant 0 : index
    %207 = vector.load %arg9[%c0_73, %c0_74] : memref<1x128xf32, #tpu.memory_space<vmem>>, vector<1x128xf32>
    %208 = vector.broadcast %207 : vector<1x128xf32> to vector<8x128xf32>
    %209 = arith.addf %206, %208 : vector<8x128xf32>
    %cst_75 = arith.constant 0.000000e+00 : f32
    %210 = vector.broadcast %cst_75 : f32 to vector<8x128xf32>
    %211 = arith.maximumf %209, %210 : vector<8x128xf32>
    %c0_76 = arith.constant 0 : index
    %c0_77 = arith.constant 0 : index
    %212 = vector.load %arg10[%c0_76, %c0_77] : memref<128x128xf32, #tpu.memory_space<vmem>>, vector<128x128xf32>
    %cst_78 = arith.constant dense<0.000000e+00> : vector<8x128xf32>
    %213 = tpu.matmul %211, %212, %cst_78 {dimension_numbers = #tpu.dot_dimension_numbers<[1], [0], [0], [1], [0, 0, 1, 1], [], []>} : vector<8x128xf32>, vector<128x128xf32>, vector<8x128xf32> -> vector<8x128xf32>
    %c0_79 = arith.constant 0 : index
    %c0_80 = arith.constant 0 : index
    %214 = vector.load %arg11[%c0_79, %c0_80] : memref<1x128xf32, #tpu.memory_space<vmem>>, vector<1x128xf32>
    %215 = vector.broadcast %214 : vector<1x128xf32> to vector<8x128xf32>
    %216 = arith.addf %213, %215 : vector<8x128xf32>
    %c0_81 = arith.constant 0 : index
    %c0_82 = arith.constant 0 : index
    %217 = vector.load %arg12[%c0_81, %c0_82] : memref<8x128xf32, #tpu.memory_space<vmem>>, vector<8x128xf32>
    tpu.vector_store %arg12[%c0_81, %c0_82], %216 {strides = array<i32>} : memref<8x128xf32, #tpu.memory_space<vmem>>, vector<8x128xf32>,
    return
  }
  func.func @transform_0(%arg0: i32) -> (i32, i32, i32) {
    %c0_i32 = arith.constant 0 : i32
    %c0_i32_0 = arith.constant 0 : i32
    %c0_i32_1 = arith.constant 0 : i32
    return %c0_i32, %arg0, %c0_i32_0 : i32, i32, i32
  }
  func.func @transform_1(%arg0: i32) -> (i32, i32) {
    %c0_i32 = arith.constant 0 : i32
    %c0_i32_0 = arith.constant 0 : i32
    %c0_i32_1 = arith.constant 0 : i32
    return %c0_i32, %c0_i32_0 : i32, i32
  }
  func.func @transform_2(%arg0: i32) -> (i32, i32) {
    %c0_i32 = arith.constant 0 : i32
    %c0_i32_0 = arith.constant 0 : i32
    %c0_i32_1 = arith.constant 0 : i32
    return %c0_i32, %c0_i32_0 : i32, i32
  }
  func.func @transform_3(%arg0: i32) -> (i32, i32) {
    %c0_i32 = arith.constant 0 : i32
    %c0_i32_0 = arith.constant 0 : i32
    %c0_i32_1 = arith.constant 0 : i32
    return %c0_i32, %c0_i32_0 : i32, i32
  }
  func.func @transform_4(%arg0: i32) -> (i32, i32) {
    %c0_i32 = arith.constant 0 : i32
    %c0_i32_0 = arith.constant 0 : i32
    %c0_i32_1 = arith.constant 0 : i32
    return %c0_i32, %c0_i32_0 : i32, i32
  }
  func.func @transform_5(%arg0: i32) -> (i32, i32) {
    %c0_i32 = arith.constant 0 : i32
    %c0_i32_0 = arith.constant 0 : i32
    %c0_i32_1 = arith.constant 0 : i32
    return %c0_i32, %c0_i32_0 : i32, i32
  }
  func.func @transform_6(%arg0: i32) -> (i32, i32) {
    %c0_i32 = arith.constant 0 : i32
    %c0_i32_0 = arith.constant 0 : i32
    %c0_i32_1 = arith.constant 0 : i32
    return %c0_i32, %c0_i32_0 : i32, i32
  }
  func.func @transform_7(%arg0: i32) -> (i32, i32) {
    %c0_i32 = arith.constant 0 : i32
    %c0_i32_0 = arith.constant 0 : i32
    %c0_i32_1 = arith.constant 0 : i32
    return %c0_i32, %c0_i32_0 : i32, i32
  }
  func.func @transform_8(%arg0: i32) -> (i32, i32) {
    %c0_i32 = arith.constant 0 : i32
    %c0_i32_0 = arith.constant 0 : i32
    %c0_i32_1 = arith.constant 0 : i32
    return %c0_i32, %c0_i32_0 : i32, i32
  }
  func.func @transform_9(%arg0: i32) -> (i32, i32) {
    %c0_i32 = arith.constant 0 : i32
    %c0_i32_0 = arith.constant 0 : i32
    %c0_i32_1 = arith.constant 0 : i32
    return %c0_i32, %c0_i32_0 : i32, i32
  }
  func.func @transform_10(%arg0: i32) -> (i32, i32) {
    %c0_i32 = arith.constant 0 : i32
    %c0_i32_0 = arith.constant 0 : i32
    %c0_i32_1 = arith.constant 0 : i32
    return %c0_i32, %c0_i32_0 : i32, i32
  }
  func.func @transform_11(%arg0: i32) -> (i32, i32) {
    %c0_i32 = arith.constant 0 : i32
    %c0_i32_0 = arith.constant 0 : i32
    return %arg0, %c0_i32 : i32, i32
  }
}

</mosaic_0001>

<llo_original>
// kernel: lan_encoder_forward.1
$region0: #{lan_encoder_forward.1}
  #allocation0 [shape = 'u32[]', space=smem, size = 0x4, offset = 0x4, fixed_abs, tag = 'smem constant byte address 0x4 - core index']
  #allocation1 [shape = 'u32[144,128]{1,0:T(1,128)}', space=vmem, size = 0x12000, scoped, tag = 'internal scratch']
  %s0 = inlined_call_operand.vmem [shape: f32[4,8,50], index: 0, kind: input, shape index: {}]
  %s1 = inlined_call_operand.vmem [shape: f32[50,128], index: 1, kind: input, shape index: {}]
  %s2 = inlined_call_operand.hbm [shape: f32[32,128], index: 2, kind: input, shape index: {}]
  %s3 = inlined_call_operand.vmem [shape: f32[1,128], index: 3, kind: input, shape index: {}]
  %s4 = inlined_call_operand.hbm [shape: f32[32,128], index: 4, kind: input, shape index: {}]
  %s5 = inlined_call_operand.hbm [shape: f32[32,128], index: 5, kind: input, shape index: {}]
  %s6 = inlined_call_operand.vmem [shape: f32[1,128], index: 6, kind: input, shape index: {}]
  %s7 = inlined_call_operand.hbm [shape: f32[128,128], index: 7, kind: input, shape index: {}]
  %s8 = inlined_call_operand.vmem [shape: f32[1,128], index: 8, kind: input, shape index: {}]
  %s9 = inlined_call_operand.hbm [shape: f32[128,128], index: 9, kind: input, shape index: {}]
  %s10 = inlined_call_operand.vmem [shape: f32[1,128], index: 10, kind: input, shape index: {}]
  %s11 = inlined_call_operand.vmem [shape: f32[8,128], index: 11, kind: output, shape index: {}]
  %s12 = sld [smem:[#allocation0]]
  $region74: #{lan_encoder_forward.1} parent=0
    _
  %s14 = ssub.s32 1, %s12
  %s15 = scalar_select 0, %s14, %s12
  $region1: #{lan_encoder_forward.1} parent=0
    #allocation2 [shape = 'u8[16384]{0}', space=vmem, size = 0x4000, scoped, tag = 'input window, operand 2, single buffered']
    #allocation3 [shape = 's32[1]{0}', space=sflag, size = 0x4, scoped, tag = 'scoped memory for lan_encoder_forward.1']
    #allocation4 [shape = 'u8[16384]{0}', space=vmem, size = 0x4000, scoped, tag = 'input window, operand 4, single buffered']
    #allocation5 [shape = 's32[1]{0}', space=sflag, size = 0x4, scoped, tag = 'scoped memory for lan_encoder_forward.1']
    #allocation6 [shape = 'u8[16384]{0}', space=vmem, size = 0x4000, scoped, tag = 'input window, operand 5, single buffered']
    #allocation7 [shape = 'u8[65536]{0}', space=vmem, size = 0x10000, scoped, tag = 'input window, operand 7, single buffered']
    #allocation8 [shape = 's32[1]{0}', space=sflag, size = 0x4, scoped, tag = 'scoped memory for lan_encoder_forward.1']
    #allocation9 [shape = 'u8[65536]{0}', space=vmem, size = 0x10000, scoped, tag = 'input window, operand 9, single buffered']
    %16 = vsyncpa [#allocation3], 0
    %17 = vsyncpa [#allocation5], 0
    %18 = vsyncpa [#allocation8], 0
    // Predicated region
    $region2: #{lan_encoder_forward.1} parent=1 // pred_check
      _
    $region3: #{lan_encoder_forward.1} parent=1 // pred_check_branch
      %20 = sbr.rel (0) target = $region5
    $region4: #{lan_encoder_forward.1} parent=1 // pred_region
      _
    $region5: #{lan_encoder_forward.1} parent=1 // pred_fallthru
      _
    // Predicated region
    $region6: #{lan_encoder_forward.1} parent=1 // pred_check
      _
    $region7: #{lan_encoder_forward.1} parent=1 // pred_check_branch
      %22 = sbr.rel (0) target = $region9
    $region8: #{lan_encoder_forward.1} parent=1 // pred_region
      _
    $region9: #{lan_encoder_forward.1} parent=1 // pred_fallthru
      _
    // Predicated region
    $region10: #{lan_encoder_forward.1} parent=1 // pred_check
      _
    $region11: #{lan_encoder_forward.1} parent=1 // pred_check_branch
      %24 = sbr.rel (0) target = $region13
    $region12: #{lan_encoder_forward.1} parent=1 // pred_region
      %s26 = ssub.s32 512, 512
      %27 = vsyncadd [#allocation3], %s26
      %s28 = sshll.u32 [#allocation2], 4
      %s29 = int_to_ptr.vmem [resolvable:$true] %s28
      %34 = dma.hbm_to_vmem [thread:$0]  %s2, 512, %s29, [#allocation3], 128, 128, 8
    $region13: #{lan_encoder_forward.1} parent=1 // pred_fallthru
      _
    // Predicated region
    $region14: #{lan_encoder_forward.1} parent=1 // pred_check
      _
    $region15: #{lan_encoder_forward.1} parent=1 // pred_check_branch
      %36 = sbr.rel (0) target = $region17
    $region16: #{lan_encoder_forward.1} parent=1 // pred_region
      _
    $region17: #{lan_encoder_forward.1} parent=1 // pred_fallthru
      _
    // Predicated region
    $region18: #{lan_encoder_forward.1} parent=1 // pred_check
      _
    $region19: #{lan_encoder_forward.1} parent=1 // pred_check_branch
      %38 = sbr.rel (0) target = $region21
    $region20: #{lan_encoder_forward.1} parent=1 // pred_region
      %s40 = ssub.s32 512, 512
      %41 = vsyncadd [#allocation5], %s40
      %s42 = sshll.u32 [#allocation4], 4
      %s43 = int_to_ptr.vmem [resolvable:$true] %s42
      %48 = dma.hbm_to_vmem [thread:$0]  %s4, 512, %s43, [#allocation5], 128, 128, 8
    $region21: #{lan_encoder_forward.1} parent=1 // pred_fallthru
      _
    // Predicated region
    $region22: #{lan_encoder_forward.1} parent=1 // pred_check
      _
    $region23: #{lan_encoder_forward.1} parent=1 // pred_check_branch
      %50 = sbr.rel (0) target = $region25
    $region24: #{lan_encoder_forward.1} parent=1 // pred_region
      %s52 = ssub.s32 512, 512
      %53 = vsyncadd [#allocation5], %s52
      %s54 = sshll.u32 [#allocation6], 4
      %s55 = int_to_ptr.vmem [resolvable:$true] %s54
      %60 = dma.hbm_to_vmem [thread:$0]  %s5, 512, %s55, [#allocation5], 128, 128, 8
    $region25: #{lan_encoder_forward.1} parent=1 // pred_fallthru
      _
    // Predicated region
    $region26: #{lan_encoder_forward.1} parent=1 // pred_check
      _
    $region27: #{lan_encoder_forward.1} parent=1 // pred_check_branch
      %62 = sbr.rel (0) target = $region29
    $region28: #{lan_encoder_forward.1} parent=1 // pred_region
      _
    $region29: #{lan_encoder_forward.1} parent=1 // pred_fallthru
      _
    // Predicated region
    $region30: #{lan_encoder_forward.1} parent=1 // pred_check
      _
    $region31: #{lan_encoder_forward.1} parent=1 // pred_check_branch
      %64 = sbr.rel (0) target = $region33
    $region32: #{lan_encoder_forward.1} parent=1 // pred_region
      %s66 = ssub.s32 2048, 2048
      %67 = vsyncadd [#allocation8], %s66
      %s68 = sshll.u32 [#allocation7], 4
      %s69 = int_to_ptr.vmem [resolvable:$true] %s68
      %74 = dma.hbm_to_vmem [thread:$0]  %s7, 2048, %s69, [#allocation8], 128, 128, 8
    $region33: #{lan_encoder_forward.1} parent=1 // pred_fallthru
      _
    // Predicated region
    $region34: #{lan_encoder_forward.1} parent=1 // pred_check
      _
    $region35: #{lan_encoder_forward.1} parent=1 // pred_check_branch
      %76 = sbr.rel (0) target = $region37
    $region36: #{lan_encoder_forward.1} parent=1 // pred_region
      _
    $region37: #{lan_encoder_forward.1} parent=1 // pred_fallthru
      _
    // Predicated region
    $region38: #{lan_encoder_forward.1} parent=1 // pred_check
      _
    $region39: #{lan_encoder_forward.1} parent=1 // pred_check_branch
      %78 = sbr.rel (0) target = $region41
    $region40: #{lan_encoder_forward.1} parent=1 // pred_region
      %s80 = ssub.s32 2048, 2048
      %81 = vsyncadd [#allocation8], %s80
      %s82 = sshll.u32 [#allocation9], 4
      %s83 = int_to_ptr.vmem [resolvable:$true] %s82
      %88 = dma.hbm_to_vmem [thread:$0]  %s9, 2048, %s83, [#allocation8], 128, 128, 8
    $region41: #{lan_encoder_forward.1} parent=1 // pred_fallthru
      _
    // Predicated region
    $region42: #{lan_encoder_forward.1} parent=1 // pred_check
      _
    $region43: #{lan_encoder_forward.1} parent=1 // pred_check_branch
      %90 = sbr.rel (0) target = $region45
    $region44: #{lan_encoder_forward.1} parent=1 // pred_region
      _
    $region45: #{lan_encoder_forward.1} parent=1 // pred_fallthru
      _
    // Predicated region
    $region46: #{lan_encoder_forward.1} parent=1 // pred_check
      _
    $region47: #{lan_encoder_forward.1} parent=1 // pred_check_branch
      %92 = sbr.rel (0) target = $region49
    $region48: #{lan_encoder_forward.1} parent=1 // pred_region
      %93 = dma.done [#allocation3], 512
    $region49: #{lan_encoder_forward.1} parent=1 // pred_fallthru
      _
    // Predicated region
    $region50: #{lan_encoder_forward.1} parent=1 // pred_check
      _
    $region51: #{lan_encoder_forward.1} parent=1 // pred_check_branch
      %95 = sbr.rel (0) target = $region53
    $region52: #{lan_encoder_forward.1} parent=1 // pred_region
      %96 = dma.done [#allocation5], 512
    $region53: #{lan_encoder_forward.1} parent=1 // pred_fallthru
      _
    // Predicated region
    $region54: #{lan_encoder_forward.1} parent=1 // pred_check
      _
    $region55: #{lan_encoder_forward.1} parent=1 // pred_check_branch
      %98 = sbr.rel (0) target = $region57
    $region56: #{lan_encoder_forward.1} parent=1 // pred_region
      %99 = dma.done [#allocation5], 512
    $region57: #{lan_encoder_forward.1} parent=1 // pred_fallthru
      _
    // Predicated region
    $region58: #{lan_encoder_forward.1} parent=1 // pred_check
      _
    $region59: #{lan_encoder_forward.1} parent=1 // pred_check_branch
      %101 = sbr.rel (0) target = $region61
    $region60: #{lan_encoder_forward.1} parent=1 // pred_region
      %102 = dma.done [#allocation8], 2048
    $region61: #{lan_encoder_forward.1} parent=1 // pred_fallthru
      _
    // Predicated region
    $region62: #{lan_encoder_forward.1} parent=1 // pred_check
      _
    $region63: #{lan_encoder_forward.1} parent=1 // pred_check_branch
      %104 = sbr.rel (0) target = $region65
    $region64: #{lan_encoder_forward.1} parent=1 // pred_region
      %105 = dma.done [#allocation8], 2048
    $region65: #{lan_encoder_forward.1} parent=1 // pred_fallthru
      _
    %v106 = vld [vmem:[%s1] sm:$0xff]
    %v107 = vld [vmem:[%s1 + $0x8] sm:$0xff]
    %v108 = vld [vmem:[%s1 + $0x10] sm:$0xff]
    %v109 = vld [vmem:[%s1 + $0x18] sm:$0xff]
    %v110 = vld [vmem:[%s1 + $0x20] sm:$0xff]
    %v111 = vld [vmem:[%s1 + $0x28] sm:$0xff]
    %v112 = vld [vmem:[%s1 + $0x30] sm:$0x3]
    %v113 = vld [vmem:[#allocation4] sm:$0xff]
    %v114 = vld [vmem:[#allocation4 + $0x8] sm:$0xff]
    %v115 = vld [vmem:[#allocation4 + $0x10] sm:$0xff]
    %v116 = vld [vmem:[#allocation4 + $0x18] sm:$0xff]
    %v117 = vld [vmem:[#allocation2] sm:$0xff]
    %v118 = vld [vmem:[#allocation2 + $0x8] sm:$0xff]
    %v119 = vld [vmem:[#allocation2 + $0x10] sm:$0xff]
    %v120 = vld [vmem:[#allocation2 + $0x18] sm:$0xff]
    %v121 = vld [vmem:[#allocation6] sm:$0xff]
    %v122 = vld [vmem:[#allocation6 + $0x8] sm:$0xff]
    %v123 = vld [vmem:[#allocation6 + $0x10] sm:$0xff]
    %v124 = vld [vmem:[#allocation6 + $0x18] sm:$0xff]
    %v125 = vld [vmem:[%s3] sm:$0x1]
    %v126 = vld [vmem:[%s6] sm:$0x1]
    %v127 = vld [vmem:[%s0] sm:$0xff]
    %v129 = vlaneseq
    %v130 = vshrl.u32 %v129, 7
    %v131 = vsub.s32 0, %v130
    %v132 = vrot.slane %v125, %v131
    %vm134 = vcmask 408576
    %v136 = vsel %vm134, %v127, 0
    %vm138 = vcmask 1041408
    %v140 = vsel %vm138, %v112, 0
    %142 = vmatprep.subr.mxu0 0.0
    %143 = vmatpush1.msra.mxu0 0.0
    %144 = vmatprep.subr.mxu0 0.0
    %145 = vmatpush1.msra.mxu0 0.0
    %146 = vmatprep.subr.mxu0 0.0
    %147 = vmatpush1.msra.mxu0 0.0
    %148 = vmatprep.subr.mxu0 0.0
    %149 = vmatpush1.msra.mxu0 0.0
    %150 = vmatprep.subr.mxu0 0.0
    %151 = vmatpush1.msra.mxu0 0.0
    %152 = vmatprep.subr.mxu0 0.0
    %153 = vmatpush1.msra.mxu0 0.0
    %154 = vmatprep.subr.mxu0 0.0
    %155 = vmatpush1.msra.mxu0 0.0
    %156 = vmatprep.subr.mxu0 0.0
    %157 = vmatpush1.msra.mxu0 0.0
    %158 = vmatprep.subr.mxu0 0.0
    %159 = vmatpush1.msra.mxu0 0.0
    %160 = vmatprep.subr.mxu0 0.0
    %161 = vmatpush1.msra.mxu0 %v140
    %162 = vmatprep.subr.mxu0 0.0
    %163 = vmatpush1.msra.mxu0 %v111
    %164 = vmatprep.subr.mxu0 0.0
    %165 = vmatpush1.msra.mxu0 %v110
    %166 = vmatprep.subr.mxu0 0.0
    %167 = vmatpush1.msra.mxu0 %v109
    %168 = vmatprep.subr.mxu0 0.0
    %169 = vmatpush1.msra.mxu0 %v108
    %170 = vmatprep.subr.mxu0 0.0
    %171 = vmatpush1.msra.mxu0 %v107
    %172 = vmatprep.subr.mxu0 0.0
    %173 = vmatpush1.msra.mxu0 %v106
    %174 = vmatprep.subr.mxu0 0.0
    %175 = vmatpush2.msra.mxu0 0.0
    %176 = vmatprep.subr.mxu0 0.0
    %177 = vmatpush2.msra.mxu0 0.0
    %178 = vmatprep.subr.mxu0 0.0
    %179 = vmatpush2.msra.mxu0 0.0
    %180 = vmatprep.subr.mxu0 0.0
    %181 = vmatpush2.msra.mxu0 0.0
    %182 = vmatprep.subr.mxu0 0.0
    %183 = vmatpush2.msra.mxu0 0.0
    %184 = vmatprep.subr.mxu0 0.0
    %185 = vmatpush2.msra.mxu0 0.0
    %186 = vmatprep.subr.mxu0 0.0
    %187 = vmatpush2.msra.mxu0 0.0
    %188 = vmatprep.subr.mxu0 0.0
    %189 = vmatpush2.msra.mxu0 0.0
    %190 = vmatprep.subr.mxu0 0.0
    %191 = vmatpush2.msra.mxu0 0.0
    %192 = vmatprep.subr.mxu0 0.0
    %193 = vmatpush2.msra.mxu0 0.0
    %194 = vmatprep.subr.mxu0 0.0
    %195 = vmatpush2.msra.mxu0 0.0
    %196 = vmatprep.subr.mxu0 0.0
    %197 = vmatpush2.msra.mxu0 0.0
    %198 = vmatprep.subr.mxu0 0.0
    %199 = vmatpush2.msra.mxu0 0.0
    %200 = vmatprep.subr.mxu0 0.0
    %201 = vmatpush2.msra.mxu0 0.0
    %202 = vmatprep.subr.mxu0 0.0
    %203 = vmatpush2.msra.mxu0 0.0
    %204 = vmatprep.subr.mxu0 0.0
    %205 = vmatpush2.msra.mxu0 0.0
    %206 = vmatprep.mubr.f32.mxu0 0.0
    %207 = vmatmul.mubr.f32.gmra.mxu0 %v136
    %v208 = vpop.f32.mrf.mxu0
    %v209 = vadd.f32 %v132, %v208
    %v210 = vpop.f32.mrf.mxu0
    %211 = vdwg.mxu0
    %s212 = scalar_lea.vmem %s0, 8
    %v213 = vld [vmem:[%s212] sm:$0xff]
    %v215 = vsel %vm134, %v213, 0
    %217 = vmatprep.subr.mxu0 0.0
    %218 = vmatpush1.msra.mxu0 0.0
    %219 = vmatprep.subr.mxu0 0.0
    %220 = vmatpush1.msra.mxu0 0.0
    %221 = vmatprep.subr.mxu0 0.0
    %222 = vmatpush1.msra.mxu0 0.0
    %223 = vmatprep.subr.mxu0 0.0
    %224 = vmatpush1.msra.mxu0 0.0
    %225 = vmatprep.subr.mxu0 0.0
    %226 = vmatpush1.msra.mxu0 0.0
    %227 = vmatprep.subr.mxu0 0.0
    %228 = vmatpush1.msra.mxu0 0.0
    %229 = vmatprep.subr.mxu0 0.0
    %230 = vmatpush1.msra.mxu0 0.0
    %231 = vmatprep.subr.mxu0 0.0
    %232 = vmatpush1.msra.mxu0 0.0
    %233 = vmatprep.subr.mxu0 0.0
    %234 = vmatpush1.msra.mxu0 0.0
    %235 = vmatprep.subr.mxu0 0.0
    %236 = vmatpush1.msra.mxu0 %v140
    %237 = vmatprep.subr.mxu0 0.0
    %238 = vmatpush1.msra.mxu0 %v111
    %239 = vmatprep.subr.mxu0 0.0
    %240 = vmatpush1.msra.mxu0 %v110
    %241 = vmatprep.subr.mxu0 0.0
    %242 = vmatpush1.msra.mxu0 %v109
    %243 = vmatprep.subr.mxu0 0.0
    %244 = vmatpush1.msra.mxu0 %v108
    %245 = vmatprep.subr.mxu0 0.0
    %246 = vmatpush1.msra.mxu0 %v107
    %247 = vmatprep.subr.mxu0 0.0
    %248 = vmatpush1.msra.mxu0 %v106
    %249 = vmatprep.subr.mxu0 0.0
    %250 = vmatpush2.msra.mxu0 0.0
    %251 = vmatprep.subr.mxu0 0.0
    %252 = vmatpush2.msra.mxu0 0.0
    %253 = vmatprep.subr.mxu0 0.0
    %254 = vmatpush2.msra.mxu0 0.0
    %255 = vmatprep.subr.mxu0 0.0
    %256 = vmatpush2.msra.mxu0 0.0
    %257 = vmatprep.subr.mxu0 0.0
    %258 = vmatpush2.msra.mxu0 0.0
    %259 = vmatprep.subr.mxu0 0.0
    %260 = vmatpush2.msra.mxu0 0.0
    %261 = vmatprep.subr.mxu0 0.0
    %262 = vmatpush2.msra.mxu0 0.0
    %263 = vmatprep.subr.mxu0 0.0
    %264 = vmatpush2.msra.mxu0 0.0
    %265 = vmatprep.subr.mxu0 0.0
    %266 = vmatpush2.msra.mxu0 0.0
    %267 = vmatprep.subr.mxu0 0.0
    %268 = vmatpush2.msra.mxu0 0.0
    %269 = vmatprep.subr.mxu0 0.0
    %270 = vmatpush2.msra.mxu0 0.0
    %271 = vmatprep.subr.mxu0 0.0
    %272 = vmatpush2.msra.mxu0 0.0
    %273 = vmatprep.subr.mxu0 0.0
    %274 = vmatpush2.msra.mxu0 0.0
    %275 = vmatprep.subr.mxu0 0.0
    %276 = vmatpush2.msra.mxu0 0.0
    %277 = vmatprep.subr.mxu0 0.0
    %278 = vmatpush2.msra.mxu0 0.0
    %279 = vmatprep.subr.mxu0 0.0
    %280 = vmatpush2.msra.mxu0 0.0
    %281 = vmatprep.mubr.f32.mxu0 0.0
    %282 = vmatmul.mubr.f32.gmra.mxu0 %v215
    %v283 = vpop.f32.mrf.mxu0
    %v284 = vadd.f32 %v132, %v283
    %v285 = vpop.f32.mrf.mxu0
    %286 = vdwg.mxu0
    %s287 = scalar_lea.vmem %s0, 16
    %v288 = vld [vmem:[%s287] sm:$0xff]
    %v290 = vsel %vm134, %v288, 0
    %292 = vmatprep.subr.mxu0 0.0
    %293 = vmatpush1.msra.mxu0 0.0
    %294 = vmatprep.subr.mxu0 0.0
    %295 = vmatpush1.msra.mxu0 0.0
    %296 = vmatprep.subr.mxu0 0.0
    %297 = vmatpush1.msra.mxu0 0.0
    %298 = vmatprep.subr.mxu0 0.0
    %299 = vmatpush1.msra.mxu0 0.0
    %300 = vmatprep.subr.mxu0 0.0
    %301 = vmatpush1.msra.mxu0 0.0
    %302 = vmatprep.subr.mxu0 0.0
    %303 = vmatpush1.msra.mxu0 0.0
    %304 = vmatprep.subr.mxu0 0.0
    %305 = vmatpush1.msra.mxu0 0.0
    %306 = vmatprep.subr.mxu0 0.0
    %307 = vmatpush1.msra.mxu0 0.0
    %308 = vmatprep.subr.mxu0 0.0
    %309 = vmatpush1.msra.mxu0 0.0
    %310 = vmatprep.subr.mxu0 0.0
    %311 = vmatpush1.msra.mxu0 %v140
    %312 = vmatprep.subr.mxu0 0.0
    %313 = vmatpush1.msra.mxu0 %v111
    %314 = vmatprep.subr.mxu0 0.0
    %315 = vmatpush1.msra.mxu0 %v110
    %316 = vmatprep.subr.mxu0 0.0
    %317 = vmatpush1.msra.mxu0 %v109
    %318 = vmatprep.subr.mxu0 0.0
    %319 = vmatpush1.msra.mxu0 %v108
    %320 = vmatprep.subr.mxu0 0.0
    %321 = vmatpush1.msra.mxu0 %v107
    %322 = vmatprep.subr.mxu0 0.0
    %323 = vmatpush1.msra.mxu0 %v106
    %324 = vmatprep.subr.mxu0 0.0
    %325 = vmatpush2.msra.mxu0 0.0
    %326 = vmatprep.subr.mxu0 0.0
    %327 = vmatpush2.msra.mxu0 0.0
    %328 = vmatprep.subr.mxu0 0.0
    %329 = vmatpush2.msra.mxu0 0.0
    %330 = vmatprep.subr.mxu0 0.0
    %331 = vmatpush2.msra.mxu0 0.0
    %332 = vmatprep.subr.mxu0 0.0
    %333 = vmatpush2.msra.mxu0 0.0
    %334 = vmatprep.subr.mxu0 0.0
    %335 = vmatpush2.msra.mxu0 0.0
    %336 = vmatprep.subr.mxu0 0.0
    %337 = vmatpush2.msra.mxu0 0.0
    %338 = vmatprep.subr.mxu0 0.0
    %339 = vmatpush2.msra.mxu0 0.0
    %340 = vmatprep.subr.mxu0 0.0
    %341 = vmatpush2.msra.mxu0 0.0
    %342 = vmatprep.subr.mxu0 0.0
    %343 = vmatpush2.msra.mxu0 0.0
    %344 = vmatprep.subr.mxu0 0.0
    %345 = vmatpush2.msra.mxu0 0.0
    %346 = vmatprep.subr.mxu0 0.0
    %347 = vmatpush2.msra.mxu0 0.0
    %348 = vmatprep.subr.mxu0 0.0
    %349 = vmatpush2.msra.mxu0 0.0
    %350 = vmatprep.subr.mxu0 0.0
    %351 = vmatpush2.msra.mxu0 0.0
    %352 = vmatprep.subr.mxu0 0.0
    %353 = vmatpush2.msra.mxu0 0.0
    %354 = vmatprep.subr.mxu0 0.0
    %355 = vmatpush2.msra.mxu0 0.0
    %356 = vmatprep.mubr.f32.mxu0 0.0
    %357 = vmatmul.mubr.f32.gmra.mxu0 %v290
    %v358 = vpop.f32.mrf.mxu0
    %v359 = vadd.f32 %v132, %v358
    %v360 = vpop.f32.mrf.mxu0
    %361 = vdwg.mxu0
    %s362 = scalar_lea.vmem %s0, 24
    %v363 = vld [vmem:[%s362] sm:$0xff]
    %v365 = vsel %vm134, %v363, 0
    %367 = vmatprep.subr.mxu0 0.0
    %368 = vmatpush1.msra.mxu0 0.0
    %369 = vmatprep.subr.mxu0 0.0
    %370 = vmatpush1.msra.mxu0 0.0
    %371 = vmatprep.subr.mxu0 0.0
    %372 = vmatpush1.msra.mxu0 0.0
    %373 = vmatprep.subr.mxu0 0.0
    %374 = vmatpush1.msra.mxu0 0.0
    %375 = vmatprep.subr.mxu0 0.0
    %376 = vmatpush1.msra.mxu0 0.0
    %377 = vmatprep.subr.mxu0 0.0
    %378 = vmatpush1.msra.mxu0 0.0
    %379 = vmatprep.subr.mxu0 0.0
    %380 = vmatpush1.msra.mxu0 0.0
    %381 = vmatprep.subr.mxu0 0.0
    %382 = vmatpush1.msra.mxu0 0.0
    %383 = vmatprep.subr.mxu0 0.0
    %384 = vmatpush1.msra.mxu0 0.0
    %385 = vmatprep.subr.mxu0 0.0
    %386 = vmatpush1.msra.mxu0 %v140
    %387 = vmatprep.subr.mxu0 0.0
    %388 = vmatpush1.msra.mxu0 %v111
    %389 = vmatprep.subr.mxu0 0.0
    %390 = vmatpush1.msra.mxu0 %v110
    %391 = vmatprep.subr.mxu0 0.0
    %392 = vmatpush1.msra.mxu0 %v109
    %393 = vmatprep.subr.mxu0 0.0
    %394 = vmatpush1.msra.mxu0 %v108
    %395 = vmatprep.subr.mxu0 0.0
    %396 = vmatpush1.msra.mxu0 %v107
    %397 = vmatprep.subr.mxu0 0.0
    %398 = vmatpush1.msra.mxu0 %v106
    %399 = vmatprep.subr.mxu0 0.0
    %400 = vmatpush2.msra.mxu0 0.0
    %401 = vmatprep.subr.mxu0 0.0
    %402 = vmatpush2.msra.mxu0 0.0
    %403 = vmatprep.subr.mxu0 0.0
    %404 = vmatpush2.msra.mxu0 0.0
    %405 = vmatprep.subr.mxu0 0.0
    %406 = vmatpush2.msra.mxu0 0.0
    %407 = vmatprep.subr.mxu0 0.0
    %408 = vmatpush2.msra.mxu0 0.0
    %409 = vmatprep.subr.mxu0 0.0
    %410 = vmatpush2.msra.mxu0 0.0
    %411 = vmatprep.subr.mxu0 0.0
    %412 = vmatpush2.msra.mxu0 0.0
    %413 = vmatprep.subr.mxu0 0.0
    %414 = vmatpush2.msra.mxu0 0.0
    %415 = vmatprep.subr.mxu0 0.0
    %416 = vmatpush2.msra.mxu0 0.0
    %417 = vmatprep.subr.mxu0 0.0
    %418 = vmatpush2.msra.mxu0 0.0
    %419 = vmatprep.subr.mxu0 0.0
    %420 = vmatpush2.msra.mxu0 0.0
    %421 = vmatprep.subr.mxu0 0.0
    %422 = vmatpush2.msra.mxu0 0.0
    %423 = vmatprep.subr.mxu0 0.0
    %424 = vmatpush2.msra.mxu0 0.0
    %425 = vmatprep.subr.mxu0 0.0
    %426 = vmatpush2.msra.mxu0 0.0
    %427 = vmatprep.subr.mxu0 0.0
    %428 = vmatpush2.msra.mxu0 0.0
    %429 = vmatprep.subr.mxu0 0.0
    %430 = vmatpush2.msra.mxu0 0.0
    %431 = vmatprep.mubr.f32.mxu0 0.0
    %432 = vmatmul.mubr.f32.gmra.mxu0 %v365
    %v433 = vpop.f32.mrf.mxu0
    %v434 = vadd.f32 %v132, %v433
    %v435 = vpop.f32.mrf.mxu0
    %436 = vdwg.mxu0
    %vm437 = vcmask 261120
    %v439 = vsel %vm437, 0.0, 0
    %441 = vmatprep.subr.mxu0 0.0
    %442 = vmatpush1.msra.mxu0 0.0
    %443 = vmatprep.subr.mxu0 0.0
    %444 = vmatpush1.msra.mxu0 0.0
    %445 = vmatprep.subr.mxu0 0.0
    %446 = vmatpush1.msra.mxu0 0.0
    %447 = vmatprep.subr.mxu0 0.0
    %448 = vmatpush1.msra.mxu0 0.0
    %449 = vmatprep.subr.mxu0 0.0
    %450 = vmatpush1.msra.mxu0 0.0
    %451 = vmatprep.subr.mxu0 0.0
    %452 = vmatpush1.msra.mxu0 0.0
    %453 = vmatprep.subr.mxu0 0.0
    %454 = vmatpush1.msra.mxu0 0.0
    %455 = vmatprep.subr.mxu0 0.0
    %456 = vmatpush1.msra.mxu0 0.0
    %457 = vmatprep.subr.mxu0 0.0
    %458 = vmatpush1.msra.mxu0 0.0
    %459 = vmatprep.subr.mxu0 0.0
    %460 = vmatpush1.msra.mxu0 0.0
    %461 = vmatprep.subr.mxu0 0.0
    %462 = vmatpush1.msra.mxu0 0.0
    %463 = vmatprep.subr.mxu0 0.0
    %464 = vmatpush1.msra.mxu0 0.0
    %465 = vmatprep.subr.mxu0 0.0
    %466 = vmatpush1.msra.mxu0 %v120
    %467 = vmatprep.subr.mxu0 0.0
    %468 = vmatpush1.msra.mxu0 %v119
    %469 = vmatprep.subr.mxu0 0.0
    %470 = vmatpush1.msra.mxu0 %v118
    %471 = vmatprep.subr.mxu0 0.0
    %472 = vmatpush1.msra.mxu0 %v117
    %473 = vmatprep.subr.mxu0 0.0
    %474 = vmatpush2.msra.mxu0 0.0
    %475 = vmatprep.subr.mxu0 0.0
    %476 = vmatpush2.msra.mxu0 0.0
    %477 = vmatprep.subr.mxu0 0.0
    %478 = vmatpush2.msra.mxu0 0.0
    %479 = vmatprep.subr.mxu0 0.0
    %480 = vmatpush2.msra.mxu0 0.0
    %481 = vmatprep.subr.mxu0 0.0
    %482 = vmatpush2.msra.mxu0 0.0
    %483 = vmatprep.subr.mxu0 0.0
    %484 = vmatpush2.msra.mxu0 0.0
    %485 = vmatprep.subr.mxu0 0.0
    %486 = vmatpush2.msra.mxu0 0.0
    %487 = vmatprep.subr.mxu0 0.0
    %488 = vmatpush2.msra.mxu0 0.0
    %489 = vmatprep.subr.mxu0 0.0
    %490 = vmatpush2.msra.mxu0 0.0
    %491 = vmatprep.subr.mxu0 0.0
    %492 = vmatpush2.msra.mxu0 0.0
    %493 = vmatprep.subr.mxu0 0.0
    %494 = vmatpush2.msra.mxu0 0.0
    %495 = vmatprep.subr.mxu0 0.0
    %496 = vmatpush2.msra.mxu0 0.0
    %497 = vmatprep.subr.mxu0 0.0
    %498 = vmatpush2.msra.mxu0 0.0
    %499 = vmatprep.subr.mxu0 0.0
    %500 = vmatpush2.msra.mxu0 0.0
    %501 = vmatprep.subr.mxu0 0.0
    %502 = vmatpush2.msra.mxu0 0.0
    %503 = vmatprep.subr.mxu0 0.0
    %504 = vmatpush2.msra.mxu0 0.0
    %505 = vmatprep.mubr.f32.mxu0 0.0
    %506 = vmatmul.mubr.f32.gmra.mxu0 %v439
    %v507 = vpop.f32.mrf.mxu0
    %v508 = vadd.f32 0.0, %v507
    %v509 = vpop.f32.mrf.mxu0
    %510 = vdwg.mxu0
    %v511 = vadd.f32 %v209, %v508
    %v512 = vmul.f32 %v511, 0.5
    %v513 = vtanh.pop %v512
    %v514 = vmul.f32 %v513, 0.5
    %v515 = vadd.f32 %v514, 0.5
    %v516 = vtanh.pop %v511
    %v517 = vmul.f32 %v515, 0.0
    %519 = vrot.lane.b32.xlu0 %v516, 64
    %v520 = vpop.permute.xlu0 %519
    %v522 = vmul.f32 %v515, %v520
    %524 = vrot.lane.b32.xlu0 %v522, 32
    %v525 = vpop.permute.xlu0 %524
    %v527 = vadd.f32 %v517, %v525
    %v528 = vtanh.pop %v527
    %530 = vrot.lane.b32.xlu0 %v528, 64
    %v531 = vpop.permute.xlu0 %530
    %v533 = vmul.f32 %v515, %v531
    %v535 = vlaneseq
    %v536 = vshrl.u32 %v535, 7
    %v537 = vsub.s32 0, %v536
    %v538 = vrot.slane %v126, %v537
    %541 = vrot.lane.b32.xlu0 %v533, 32
    %v542 = vpop.permute.xlu0 %541
    %v543 = vsel %vm437, %v542, 0
    %545 = vmatprep.subr.mxu0 0.0
    %546 = vmatpush1.msra.mxu0 0.0
    %547 = vmatprep.subr.mxu0 0.0
    %548 = vmatpush1.msra.mxu0 0.0
    %549 = vmatprep.subr.mxu0 0.0
    %550 = vmatpush1.msra.mxu0 0.0
    %551 = vmatprep.subr.mxu0 0.0
    %552 = vmatpush1.msra.mxu0 0.0
    %553 = vmatprep.subr.mxu0 0.0
    %554 = vmatpush1.msra.mxu0 0.0
    %555 = vmatprep.subr.mxu0 0.0
    %556 = vmatpush1.msra.mxu0 0.0
    %557 = vmatprep.subr.mxu0 0.0
    %558 = vmatpush1.msra.mxu0 0.0
    %559 = vmatprep.subr.mxu0 0.0
    %560 = vmatpush1.msra.mxu0 0.0
    %561 = vmatprep.subr.mxu0 0.0
    %562 = vmatpush1.msra.mxu0 0.0
    %563 = vmatprep.subr.mxu0 0.0
    %564 = vmatpush1.msra.mxu0 0.0
    %565 = vmatprep.subr.mxu0 0.0
    %566 = vmatpush1.msra.mxu0 0.0
    %567 = vmatprep.subr.mxu0 0.0
    %568 = vmatpush1.msra.mxu0 0.0
    %569 = vmatprep.subr.mxu0 0.0
    %570 = vmatpush1.msra.mxu0 %v116
    %571 = vmatprep.subr.mxu0 0.0
    %572 = vmatpush1.msra.mxu0 %v115
    %573 = vmatprep.subr.mxu0 0.0
    %574 = vmatpush1.msra.mxu0 %v114
    %575 = vmatprep.subr.mxu0 0.0
    %576 = vmatpush1.msra.mxu0 %v113
    %577 = vmatprep.subr.mxu0 0.0
    %578 = vmatpush2.msra.mxu0 0.0
    %579 = vmatprep.subr.mxu0 0.0
    %580 = vmatpush2.msra.mxu0 0.0
    %581 = vmatprep.subr.mxu0 0.0
    %582 = vmatpush2.msra.mxu0 0.0
    %583 = vmatprep.subr.mxu0 0.0
    %584 = vmatpush2.msra.mxu0 0.0
    %585 = vmatprep.subr.mxu0 0.0
    %586 = vmatpush2.msra.mxu0 0.0
    %587 = vmatprep.subr.mxu0 0.0
    %588 = vmatpush2.msra.mxu0 0.0
    %589 = vmatprep.subr.mxu0 0.0
    %590 = vmatpush2.msra.mxu0 0.0
    %591 = vmatprep.subr.mxu0 0.0
    %592 = vmatpush2.msra.mxu0 0.0
    %593 = vmatprep.subr.mxu0 0.0
    %594 = vmatpush2.msra.mxu0 0.0
    %595 = vmatprep.subr.mxu0 0.0
    %596 = vmatpush2.msra.mxu0 0.0
    %597 = vmatprep.subr.mxu0 0.0
    %598 = vmatpush2.msra.mxu0 0.0
    %599 = vmatprep.subr.mxu0 0.0
    %600 = vmatpush2.msra.mxu0 0.0
    %601 = vmatprep.subr.mxu0 0.0
    %602 = vmatpush2.msra.mxu0 0.0
    %603 = vmatprep.subr.mxu0 0.0
    %604 = vmatpush2.msra.mxu0 0.0
    %605 = vmatprep.subr.mxu0 0.0
    %606 = vmatpush2.msra.mxu0 0.0
    %607 = vmatprep.subr.mxu0 0.0
    %608 = vmatpush2.msra.mxu0 0.0
    %609 = vmatprep.mubr.f32.mxu0 0.0
    %610 = vmatmul.mubr.f32.gmra.mxu0 %v543
    %v611 = vpop.f32.mrf.mxu0
    %v612 = vadd.f32 %v538, %v611
    %v613 = vpop.f32.mrf.mxu0
    %614 = vdwg.mxu0
    %615 = vmatprep.subr.mxu0 0.0
    %616 = vmatpush1.msra.mxu0 0.0
    %617 = vmatprep.subr.mxu0 0.0
    %618 = vmatpush1.msra.mxu0 0.0
    %619 = vmatprep.subr.mxu0 0.0
    %620 = vmatpush1.msra.mxu0 0.0
    %621 = vmatprep.subr.mxu0 0.0
    %622 = vmatpush1.msra.mxu0 0.0
    %623 = vmatprep.subr.mxu0 0.0
    %624 = vmatpush1.msra.mxu0 0.0
    %625 = vmatprep.subr.mxu0 0.0
    %626 = vmatpush1.msra.mxu0 0.0
    %627 = vmatprep.subr.mxu0 0.0
    %628 = vmatpush1.msra.mxu0 0.0
    %629 = vmatprep.subr.mxu0 0.0
    %630 = vmatpush1.msra.mxu0 0.0
    %631 = vmatprep.subr.mxu0 0.0
    %632 = vmatpush1.msra.mxu0 0.0
    %633 = vmatprep.subr.mxu0 0.0
    %634 = vmatpush1.msra.mxu0 0.0
    %635 = vmatprep.subr.mxu0 0.0
    %636 = vmatpush1.msra.mxu0 0.0
    %637 = vmatprep.subr.mxu0 0.0
    %638 = vmatpush1.msra.mxu0 0.0
    %639 = vmatprep.subr.mxu0 0.0
    %640 = vmatpush1.msra.mxu0 %v124
    %641 = vmatprep.subr.mxu0 0.0
    %642 = vmatpush1.msra.mxu0 %v123
    %643 = vmatprep.subr.mxu0 0.0
    %644 = vmatpush1.msra.mxu0 %v122
    %645 = vmatprep.subr.mxu0 0.0
    %646 = vmatpush1.msra.mxu0 %v121
    %647 = vmatprep.subr.mxu0 0.0
    %648 = vmatpush2.msra.mxu0 0.0
    %649 = vmatprep.subr.mxu0 0.0
    %650 = vmatpush2.msra.mxu0 0.0
    %651 = vmatprep.subr.mxu0 0.0
    %652 = vmatpush2.msra.mxu0 0.0
    %653 = vmatprep.subr.mxu0 0.0
    %654 = vmatpush2.msra.mxu0 0.0
    %655 = vmatprep.subr.mxu0 0.0
    %656 = vmatpush2.msra.mxu0 0.0
    %657 = vmatprep.subr.mxu0 0.0
    %658 = vmatpush2.msra.mxu0 0.0
    %659 = vmatprep.subr.mxu0 0.0
    %660 = vmatpush2.msra.mxu0 0.0
    %661 = vmatprep.subr.mxu0 0.0
    %662 = vmatpush2.msra.mxu0 0.0
    %663 = vmatprep.subr.mxu0 0.0
    %664 = vmatpush2.msra.mxu0 0.0
    %665 = vmatprep.subr.mxu0 0.0
    %666 = vmatpush2.msra.mxu0 0.0
    %667 = vmatprep.subr.mxu0 0.0
    %668 = vmatpush2.msra.mxu0 0.0
    %669 = vmatprep.subr.mxu0 0.0
    %670 = vmatpush2.msra.mxu0 0.0
    %671 = vmatprep.subr.mxu0 0.0
    %672 = vmatpush2.msra.mxu0 0.0
    %673 = vmatprep.subr.mxu0 0.0
    %674 = vmatpush2.msra.mxu0 0.0
    %675 = vmatprep.subr.mxu0 0.0
    %676 = vmatpush2.msra.mxu0 0.0
    %677 = vmatprep.subr.mxu0 0.0
    %678 = vmatpush2.msra.mxu0 0.0
    %679 = vmatprep.mubr.f32.mxu0 0.0
    %680 = vmatmul.mubr.f32.gmra.mxu0 %v439
    %v681 = vpop.f32.mrf.mxu0
    %v682 = vadd.f32 0.0, %v681
    %v683 = vpop.f32.mrf.mxu0
    %684 = vdwg.mxu0
    %v685 = vadd.f32 %v612, %v682
    %v686 = vmul.f32 %v685, 0.5
    %v687 = vtanh.pop %v686
    %v688 = vmul.f32 %v687, 0.5
    %v689 = vadd.f32 %v688, 0.5
    %v690 = vtanh.pop %v685
    %v691 = vmul.f32 %v689, 0.0
    %693 = vrot.lane.b32.xlu0 %v690, 64
    %v694 = vpop.permute.xlu0 %693
    %v696 = vmul.f32 %v689, %v694
    %698 = vrot.lane.b32.xlu0 %v696, 32
    %v699 = vpop.permute.xlu0 %698
    %v701 = vadd.f32 %v691, %v699
    %v702 = vtanh.pop %v701
    %704 = vrot.lane.b32.xlu0 %v702, 64
    %v705 = vpop.permute.xlu0 %704
    %v707 = vmul.f32 %v689, %v705
    %v708 = vld [vmem:[#allocation7] sm:$0xff]
    %v709 = vld [vmem:[#allocation7 + $0x8] sm:$0xff]
    %v710 = vld [vmem:[#allocation7 + $0x10] sm:$0xff]
    %v711 = vld [vmem:[#allocation7 + $0x18] sm:$0xff]
    %712 = vmatprep.subr.mxu0 0.0
    %713 = vmatpush1.msra.mxu0 0.0
    %714 = vmatprep.subr.mxu0 0.0
    %715 = vmatpush1.msra.mxu0 0.0
    %716 = vmatprep.subr.mxu0 0.0
    %717 = vmatpush1.msra.mxu0 0.0
    %718 = vmatprep.subr.mxu0 0.0
    %719 = vmatpush1.msra.mxu0 0.0
    %720 = vmatprep.subr.mxu0 0.0
    %721 = vmatpush1.msra.mxu0 0.0
    %722 = vmatprep.subr.mxu0 0.0
    %723 = vmatpush1.msra.mxu0 0.0
    %724 = vmatprep.subr.mxu0 0.0
    %725 = vmatpush1.msra.mxu0 0.0
    %726 = vmatprep.subr.mxu0 0.0
    %727 = vmatpush1.msra.mxu0 0.0
    %728 = vmatprep.subr.mxu0 0.0
    %729 = vmatpush1.msra.mxu0 0.0
    %730 = vmatprep.subr.mxu0 0.0
    %731 = vmatpush1.msra.mxu0 0.0
    %732 = vmatprep.subr.mxu0 0.0
    %733 = vmatpush1.msra.mxu0 0.0
    %734 = vmatprep.subr.mxu0 0.0
    %735 = vmatpush1.msra.mxu0 0.0
    %736 = vmatprep.subr.mxu0 0.0
    %737 = vmatpush1.msra.mxu0 %v120
    %738 = vmatprep.subr.mxu0 0.0
    %739 = vmatpush1.msra.mxu0 %v119
    %740 = vmatprep.subr.mxu0 0.0
    %741 = vmatpush1.msra.mxu0 %v118
    %742 = vmatprep.subr.mxu0 0.0
    %743 = vmatpush1.msra.mxu0 %v117
    %744 = vmatprep.subr.mxu0 0.0
    %745 = vmatpush2.msra.mxu0 0.0
    %746 = vmatprep.subr.mxu0 0.0
    %747 = vmatpush2.msra.mxu0 0.0
    %748 = vmatprep.subr.mxu0 0.0
    %749 = vmatpush2.msra.mxu0 0.0
    %750 = vmatprep.subr.mxu0 0.0
    %751 = vmatpush2.msra.mxu0 0.0
    %752 = vmatprep.subr.mxu0 0.0
    %753 = vmatpush2.msra.mxu0 0.0
    %754 = vmatprep.subr.mxu0 0.0
    %755 = vmatpush2.msra.mxu0 0.0
    %756 = vmatprep.subr.mxu0 0.0
    %757 = vmatpush2.msra.mxu0 0.0
    %758 = vmatprep.subr.mxu0 0.0
    %759 = vmatpush2.msra.mxu0 0.0
    %760 = vmatprep.subr.mxu0 0.0
    %761 = vmatpush2.msra.mxu0 0.0
    %762 = vmatprep.subr.mxu0 0.0
    %763 = vmatpush2.msra.mxu0 0.0
    %764 = vmatprep.subr.mxu0 0.0
    %765 = vmatpush2.msra.mxu0 0.0
    %766 = vmatprep.subr.mxu0 0.0
    %767 = vmatpush2.msra.mxu0 0.0
    %768 = vmatprep.subr.mxu0 0.0
    %769 = vmatpush2.msra.mxu0 0.0
    %770 = vmatprep.subr.mxu0 0.0
    %771 = vmatpush2.msra.mxu0 0.0
    %772 = vmatprep.subr.mxu0 0.0
    %773 = vmatpush2.msra.mxu0 0.0
    %774 = vmatprep.subr.mxu0 0.0
    %775 = vmatpush2.msra.mxu0 0.0
    %776 = vmatprep.mubr.f32.mxu0 0.0
    %777 = vmatmul.mubr.f32.gmra.mxu0 %v543
    %v778 = vpop.f32.mrf.mxu0
    %v779 = vadd.f32 0.0, %v778
    %v780 = vpop.f32.mrf.mxu0
    %781 = vdwg.mxu0
    %v782 = vadd.f32 %v284, %v779
    %v783 = vmul.f32 %v782, 0.5
    %v784 = vtanh.pop %v783
    %v785 = vmul.f32 %v784, 0.5
    %v786 = vadd.f32 %v785, 0.5
    %v787 = vtanh.pop %v782
    %v788 = vmul.f32 %v786, %v527
    %790 = vrot.lane.b32.xlu0 %v787, 64
    %v791 = vpop.permute.xlu0 %790
    %v793 = vmul.f32 %v786, %v791
    %795 = vrot.lane.b32.xlu0 %v793, 32
    %v796 = vpop.permute.xlu0 %795
    %v798 = vadd.f32 %v788, %v796
    %v799 = vtanh.pop %v798
    %801 = vrot.lane.b32.xlu0 %v799, 64
    %v802 = vpop.permute.xlu0 %801
    %v804 = vmul.f32 %v786, %v802
    %806 = vrot.lane.b32.xlu0 %v804, 32
    %v807 = vpop.permute.xlu0 %806
    %v808 = vsel %vm437, %v807, 0
    %810 = vmatprep.subr.mxu0 0.0
    %811 = vmatpush1.msra.mxu0 0.0
    %812 = vmatprep.subr.mxu0 0.0
    %813 = vmatpush1.msra.mxu0 0.0
    %814 = vmatprep.subr.mxu0 0.0
    %815 = vmatpush1.msra.mxu0 0.0
    %816 = vmatprep.subr.mxu0 0.0
    %817 = vmatpush1.msra.mxu0 0.0
    %818 = vmatprep.subr.mxu0 0.0
    %819 = vmatpush1.msra.mxu0 0.0
    %820 = vmatprep.subr.mxu0 0.0
    %821 = vmatpush1.msra.mxu0 0.0
    %822 = vmatprep.subr.mxu0 0.0
    %823 = vmatpush1.msra.mxu0 0.0
    %824 = vmatprep.subr.mxu0 0.0
    %825 = vmatpush1.msra.mxu0 0.0
    %826 = vmatprep.subr.mxu0 0.0
    %827 = vmatpush1.msra.mxu0 0.0
    %828 = vmatprep.subr.mxu0 0.0
    %829 = vmatpush1.msra.mxu0 0.0
    %830 = vmatprep.subr.mxu0 0.0
    %831 = vmatpush1.msra.mxu0 0.0
    %832 = vmatprep.subr.mxu0 0.0
    %833 = vmatpush1.msra.mxu0 0.0
    %834 = vmatprep.subr.mxu0 0.0
    %835 = vmatpush1.msra.mxu0 %v116
    %836 = vmatprep.subr.mxu0 0.0
    %837 = vmatpush1.msra.mxu0 %v115
    %838 = vmatprep.subr.mxu0 0.0
    %839 = vmatpush1.msra.mxu0 %v114
    %840 = vmatprep.subr.mxu0 0.0
    %841 = vmatpush1.msra.mxu0 %v113
    %842 = vmatprep.subr.mxu0 0.0
    %843 = vmatpush2.msra.mxu0 0.0
    %844 = vmatprep.subr.mxu0 0.0
    %845 = vmatpush2.msra.mxu0 0.0
    %846 = vmatprep.subr.mxu0 0.0
    %847 = vmatpush2.msra.mxu0 0.0
    %848 = vmatprep.subr.mxu0 0.0
    %849 = vmatpush2.msra.mxu0 0.0
    %850 = vmatprep.subr.mxu0 0.0
    %851 = vmatpush2.msra.mxu0 0.0
    %852 = vmatprep.subr.mxu0 0.0
    %853 = vmatpush2.msra.mxu0 0.0
    %854 = vmatprep.subr.mxu0 0.0
    %855 = vmatpush2.msra.mxu0 0.0
    %856 = vmatprep.subr.mxu0 0.0
    %857 = vmatpush2.msra.mxu0 0.0
    %858 = vmatprep.subr.mxu0 0.0
    %859 = vmatpush2.msra.mxu0 0.0
    %860 = vmatprep.subr.mxu0 0.0
    %861 = vmatpush2.msra.mxu0 0.0
    %862 = vmatprep.subr.mxu0 0.0
    %863 = vmatpush2.msra.mxu0 0.0
    %864 = vmatprep.subr.mxu0 0.0
    %865 = vmatpush2.msra.mxu0 0.0
    %866 = vmatprep.subr.mxu0 0.0
    %867 = vmatpush2.msra.mxu0 0.0
    %868 = vmatprep.subr.mxu0 0.0
    %869 = vmatpush2.msra.mxu0 0.0
    %870 = vmatprep.subr.mxu0 0.0
    %871 = vmatpush2.msra.mxu0 0.0
    %872 = vmatprep.subr.mxu0 0.0
    %873 = vmatpush2.msra.mxu0 0.0
    %874 = vmatprep.mubr.f32.mxu0 0.0
    %875 = vmatmul.mubr.f32.gmra.mxu0 %v808
    %v876 = vpop.f32.mrf.mxu0
    %v877 = vadd.f32 %v538, %v876
    %v878 = vpop.f32.mrf.mxu0
    %879 = vdwg.mxu0
    %881 = vrot.lane.b32.xlu0 %v707, 32
    %v882 = vpop.permute.xlu0 %881
    %v883 = vsel %vm437, %v882, 0
    %885 = vmatprep.subr.mxu0 0.0
    %886 = vmatpush1.msra.mxu0 0.0
    %887 = vmatprep.subr.mxu0 0.0
    %888 = vmatpush1.msra.mxu0 0.0
    %889 = vmatprep.subr.mxu0 0.0
    %890 = vmatpush1.msra.mxu0 0.0
    %891 = vmatprep.subr.mxu0 0.0
    %892 = vmatpush1.msra.mxu0 0.0
    %893 = vmatprep.subr.mxu0 0.0
    %894 = vmatpush1.msra.mxu0 0.0
    %895 = vmatprep.subr.mxu0 0.0
    %896 = vmatpush1.msra.mxu0 0.0
    %897 = vmatprep.subr.mxu0 0.0
    %898 = vmatpush1.msra.mxu0 0.0
    %899 = vmatprep.subr.mxu0 0.0
    %900 = vmatpush1.msra.mxu0 0.0
    %901 = vmatprep.subr.mxu0 0.0
    %902 = vmatpush1.msra.mxu0 0.0
    %903 = vmatprep.subr.mxu0 0.0
    %904 = vmatpush1.msra.mxu0 0.0
    %905 = vmatprep.subr.mxu0 0.0
    %906 = vmatpush1.msra.mxu0 0.0
    %907 = vmatprep.subr.mxu0 0.0
    %908 = vmatpush1.msra.mxu0 0.0
    %909 = vmatprep.subr.mxu0 0.0
    %910 = vmatpush1.msra.mxu0 %v124
    %911 = vmatprep.subr.mxu0 0.0
    %912 = vmatpush1.msra.mxu0 %v123
    %913 = vmatprep.subr.mxu0 0.0
    %914 = vmatpush1.msra.mxu0 %v122
    %915 = vmatprep.subr.mxu0 0.0
    %916 = vmatpush1.msra.mxu0 %v121
    %917 = vmatprep.subr.mxu0 0.0
    %918 = vmatpush2.msra.mxu0 0.0
    %919 = vmatprep.subr.mxu0 0.0
    %920 = vmatpush2.msra.mxu0 0.0
    %921 = vmatprep.subr.mxu0 0.0
    %922 = vmatpush2.msra.mxu0 0.0
    %923 = vmatprep.subr.mxu0 0.0
    %924 = vmatpush2.msra.mxu0 0.0
    %925 = vmatprep.subr.mxu0 0.0
    %926 = vmatpush2.msra.mxu0 0.0
    %927 = vmatprep.subr.mxu0 0.0
    %928 = vmatpush2.msra.mxu0 0.0
    %929 = vmatprep.subr.mxu0 0.0
    %930 = vmatpush2.msra.mxu0 0.0
    %931 = vmatprep.subr.mxu0 0.0
    %932 = vmatpush2.msra.mxu0 0.0
    %933 = vmatprep.subr.mxu0 0.0
    %934 = vmatpush2.msra.mxu0 0.0
    %935 = vmatprep.subr.mxu0 0.0
    %936 = vmatpush2.msra.mxu0 0.0
    %937 = vmatprep.subr.mxu0 0.0
    %938 = vmatpush2.msra.mxu0 0.0
    %939 = vmatprep.subr.mxu0 0.0
    %940 = vmatpush2.msra.mxu0 0.0
    %941 = vmatprep.subr.mxu0 0.0
    %942 = vmatpush2.msra.mxu0 0.0
    %943 = vmatprep.subr.mxu0 0.0
    %944 = vmatpush2.msra.mxu0 0.0
    %945 = vmatprep.subr.mxu0 0.0
    %946 = vmatpush2.msra.mxu0 0.0
    %947 = vmatprep.subr.mxu0 0.0
    %948 = vmatpush2.msra.mxu0 0.0
    %949 = vmatprep.mubr.f32.mxu0 0.0
    %950 = vmatmul.mubr.f32.gmra.mxu0 %v883
    %v951 = vpop.f32.mrf.mxu0
    %v952 = vadd.f32 0.0, %v951
    %v953 = vpop.f32.mrf.mxu0
    %954 = vdwg.mxu0
    %v955 = vadd.f32 %v877, %v952
    %v956 = vmul.f32 %v955, 0.5
    %v957 = vtanh.pop %v956
    %v958 = vmul.f32 %v957, 0.5
    %v959 = vadd.f32 %v958, 0.5
    %v960 = vtanh.pop %v955
    %v961 = vmul.f32 %v959, %v701
    %963 = vrot.lane.b32.xlu0 %v960, 64
    %v964 = vpop.permute.xlu0 %963
    %v966 = vmul.f32 %v959, %v964
    %968 = vrot.lane.b32.xlu0 %v966, 32
    %v969 = vpop.permute.xlu0 %968
    %v971 = vadd.f32 %v961, %v969
    %v972 = vtanh.pop %v971
    %974 = vrot.lane.b32.xlu0 %v972, 64
    %v975 = vpop.permute.xlu0 %974
    %v977 = vmul.f32 %v959, %v975
    %v978 = vld [vmem:[#allocation7 + $0x20] sm:$0xff]
    %v979 = vld [vmem:[#allocation7 + $0x28] sm:$0xff]
    %v980 = vld [vmem:[#allocation7 + $0x30] sm:$0xff]
    %v981 = vld [vmem:[#allocation7 + $0x38] sm:$0xff]
    %983 = vrot.lane.b32.xlu0 %v977, 32
    %v984 = vpop.permute.xlu0 %983
    %v985 = vsel %vm437, %v984, 0
    %987 = vmatprep.subr.mxu0 0.0
    %988 = vmatpush1.msra.mxu0 0.0
    %989 = vmatprep.subr.mxu0 0.0
    %990 = vmatpush1.msra.mxu0 0.0
    %991 = vmatprep.subr.mxu0 0.0
    %992 = vmatpush1.msra.mxu0 0.0
    %993 = vmatprep.subr.mxu0 0.0
    %994 = vmatpush1.msra.mxu0 0.0
    %995 = vmatprep.subr.mxu0 0.0
    %996 = vmatpush1.msra.mxu0 0.0
    %997 = vmatprep.subr.mxu0 0.0
    %998 = vmatpush1.msra.mxu0 0.0
    %999 = vmatprep.subr.mxu0 0.0
    %1000 = vmatpush1.msra.mxu0 0.0
    %1001 = vmatprep.subr.mxu0 0.0
    %1002 = vmatpush1.msra.mxu0 0.0
    %1003 = vmatprep.subr.mxu0 0.0
    %1004 = vmatpush1.msra.mxu0 0.0
    %1005 = vmatprep.subr.mxu0 0.0
    %1006 = vmatpush1.msra.mxu0 0.0
    %1007 = vmatprep.subr.mxu0 0.0
    %1008 = vmatpush1.msra.mxu0 0.0
    %1009 = vmatprep.subr.mxu0 0.0
    %1010 = vmatpush1.msra.mxu0 0.0
    %1011 = vmatprep.subr.mxu0 0.0
    %1012 = vmatpush1.msra.mxu0 %v981
    %1013 = vmatprep.subr.mxu0 0.0
    %1014 = vmatpush1.msra.mxu0 %v980
    %1015 = vmatprep.subr.mxu0 0.0
    %1016 = vmatpush1.msra.mxu0 %v979
    %1017 = vmatprep.subr.mxu0 0.0
    %1018 = vmatpush1.msra.mxu0 %v978
    %1019 = vmatprep.subr.mxu0 0.0
    %1020 = vmatpush2.msra.mxu0 0.0
    %1021 = vmatprep.subr.mxu0 0.0
    %1022 = vmatpush2.msra.mxu0 0.0
    %1023 = vmatprep.subr.mxu0 0.0
    %1024 = vmatpush2.msra.mxu0 0.0
    %1025 = vmatprep.subr.mxu0 0.0
    %1026 = vmatpush2.msra.mxu0 0.0
    %1027 = vmatprep.subr.mxu0 0.0
    %1028 = vmatpush2.msra.mxu0 0.0
    %1029 = vmatprep.subr.mxu0 0.0
    %1030 = vmatpush2.msra.mxu0 0.0
    %1031 = vmatprep.subr.mxu0 0.0
    %1032 = vmatpush2.msra.mxu0 0.0
    %1033 = vmatprep.subr.mxu0 0.0
    %1034 = vmatpush2.msra.mxu0 0.0
    %1035 = vmatprep.subr.mxu0 0.0
    %1036 = vmatpush2.msra.mxu0 0.0
    %1037 = vmatprep.subr.mxu0 0.0
    %1038 = vmatpush2.msra.mxu0 0.0
    %1039 = vmatprep.subr.mxu0 0.0
    %1040 = vmatpush2.msra.mxu0 0.0
    %1041 = vmatprep.subr.mxu0 0.0
    %1042 = vmatpush2.msra.mxu0 0.0
    %1043 = vmatprep.subr.mxu0 0.0
    %1044 = vmatpush2.msra.mxu0 0.0
    %1045 = vmatprep.subr.mxu0 0.0
    %1046 = vmatpush2.msra.mxu0 0.0
    %1047 = vmatprep.subr.mxu0 0.0
    %1048 = vmatpush2.msra.mxu0 0.0
    %1049 = vmatprep.subr.mxu0 0.0
    %1050 = vmatpush2.msra.mxu0 0.0
    %1051 = vmatprep.mubr.f32.mxu0 0.0
    %1052 = vmatmul.mubr.f32.gmra.mxu0 %v985
    %v1053 = vpop.f32.mrf.mxu0
    %v1054 = vadd.f32 0.0, %v1053
    %v1055 = vpop.f32.mrf.mxu0
    %1056 = vdwg.mxu0
    %1057 = vmatprep.subr.mxu0 0.0
    %1058 = vmatpush1.msra.mxu0 0.0
    %1059 = vmatprep.subr.mxu0 0.0
    %1060 = vmatpush1.msra.mxu0 0.0
    %1061 = vmatprep.subr.mxu0 0.0
    %1062 = vmatpush1.msra.mxu0 0.0
    %1063 = vmatprep.subr.mxu0 0.0
    %1064 = vmatpush1.msra.mxu0 0.0
    %1065 = vmatprep.subr.mxu0 0.0
    %1066 = vmatpush1.msra.mxu0 0.0
    %1067 = vmatprep.subr.mxu0 0.0
    %1068 = vmatpush1.msra.mxu0 0.0
    %1069 = vmatprep.subr.mxu0 0.0
    %1070 = vmatpush1.msra.mxu0 0.0
    %1071 = vmatprep.subr.mxu0 0.0
    %1072 = vmatpush1.msra.mxu0 0.0
    %1073 = vmatprep.subr.mxu0 0.0
    %1074 = vmatpush1.msra.mxu0 0.0
    %1075 = vmatprep.subr.mxu0 0.0
    %1076 = vmatpush1.msra.mxu0 0.0
    %1077 = vmatprep.subr.mxu0 0.0
    %1078 = vmatpush1.msra.mxu0 0.0
    %1079 = vmatprep.subr.mxu0 0.0
    %1080 = vmatpush1.msra.mxu0 0.0
    %1081 = vmatprep.subr.mxu0 0.0
    %1082 = vmatpush1.msra.mxu0 %v711
    %1083 = vmatprep.subr.mxu0 0.0
    %1084 = vmatpush1.msra.mxu0 %v710
    %1085 = vmatprep.subr.mxu0 0.0
    %1086 = vmatpush1.msra.mxu0 %v709
    %1087 = vmatprep.subr.mxu0 0.0
    %1088 = vmatpush1.msra.mxu0 %v708
    %1089 = vmatprep.subr.mxu0 0.0
    %1090 = vmatpush2.msra.mxu0 0.0
    %1091 = vmatprep.subr.mxu0 0.0
    %1092 = vmatpush2.msra.mxu0 0.0
    %1093 = vmatprep.subr.mxu0 0.0
    %1094 = vmatpush2.msra.mxu0 0.0
    %1095 = vmatprep.subr.mxu0 0.0
    %1096 = vmatpush2.msra.mxu0 0.0
    %1097 = vmatprep.subr.mxu0 0.0
    %1098 = vmatpush2.msra.mxu0 0.0
    %1099 = vmatprep.subr.mxu0 0.0
    %1100 = vmatpush2.msra.mxu0 0.0
    %1101 = vmatprep.subr.mxu0 0.0
    %1102 = vmatpush2.msra.mxu0 0.0
    %1103 = vmatprep.subr.mxu0 0.0
    %1104 = vmatpush2.msra.mxu0 0.0
    %1105 = vmatprep.subr.mxu0 0.0
    %1106 = vmatpush2.msra.mxu0 0.0
    %1107 = vmatprep.subr.mxu0 0.0
    %1108 = vmatpush2.msra.mxu0 0.0
    %1109 = vmatprep.subr.mxu0 0.0
    %1110 = vmatpush2.msra.mxu0 0.0
    %1111 = vmatprep.subr.mxu0 0.0
    %1112 = vmatpush2.msra.mxu0 0.0
    %1113 = vmatprep.subr.mxu0 0.0
    %1114 = vmatpush2.msra.mxu0 0.0
    %1115 = vmatprep.subr.mxu0 0.0
    %1116 = vmatpush2.msra.mxu0 0.0
    %1117 = vmatprep.subr.mxu0 0.0
    %1118 = vmatpush2.msra.mxu0 0.0
    %1119 = vmatprep.subr.mxu0 0.0
    %1120 = vmatpush2.msra.mxu0 0.0
    %1121 = vmatprep.mubr.f32.mxu0 0.0
    %1122 = vmatmul.mubr.f32.gmra.mxu0 %v883
    %v1123 = vpop.f32.mrf.mxu0
    %v1124 = vadd.f32 %v1054, %v1123
    %v1125 = vpop.f32.mrf.mxu0
    %1126 = vdwg.mxu0
    %1127 = vmatprep.subr.mxu0 0.0
    %1128 = vmatpush1.msra.mxu0 0.0
    %1129 = vmatprep.subr.mxu0 0.0
    %1130 = vmatpush1.msra.mxu0 0.0
    %1131 = vmatprep.subr.mxu0 0.0
    %1132 = vmatpush1.msra.mxu0 0.0
    %1133 = vmatprep.subr.mxu0 0.0
    %1134 = vmatpush1.msra.mxu0 0.0
    %1135 = vmatprep.subr.mxu0 0.0
    %1136 = vmatpush1.msra.mxu0 0.0
    %1137 = vmatprep.subr.mxu0 0.0
    %1138 = vmatpush1.msra.mxu0 0.0
    %1139 = vmatprep.subr.mxu0 0.0
    %1140 = vmatpush1.msra.mxu0 0.0
    %1141 = vmatprep.subr.mxu0 0.0
    %1142 = vmatpush1.msra.mxu0 0.0
    %1143 = vmatprep.subr.mxu0 0.0
    %1144 = vmatpush1.msra.mxu0 0.0
    %1145 = vmatprep.subr.mxu0 0.0
    %1146 = vmatpush1.msra.mxu0 0.0
    %1147 = vmatprep.subr.mxu0 0.0
    %1148 = vmatpush1.msra.mxu0 0.0
    %1149 = vmatprep.subr.mxu0 0.0
    %1150 = vmatpush1.msra.mxu0 0.0
    %1151 = vmatprep.subr.mxu0 0.0
    %1152 = vmatpush1.msra.mxu0 %v120
    %1153 = vmatprep.subr.mxu0 0.0
    %1154 = vmatpush1.msra.mxu0 %v119
    %1155 = vmatprep.subr.mxu0 0.0
    %1156 = vmatpush1.msra.mxu0 %v118
    %1157 = vmatprep.subr.mxu0 0.0
    %1158 = vmatpush1.msra.mxu0 %v117
    %1159 = vmatprep.subr.mxu0 0.0
    %1160 = vmatpush2.msra.mxu0 0.0
    %1161 = vmatprep.subr.mxu0 0.0
    %1162 = vmatpush2.msra.mxu0 0.0
    %1163 = vmatprep.subr.mxu0 0.0
    %1164 = vmatpush2.msra.mxu0 0.0
    %1165 = vmatprep.subr.mxu0 0.0
    %1166 = vmatpush2.msra.mxu0 0.0
    %1167 = vmatprep.subr.mxu0 0.0
    %1168 = vmatpush2.msra.mxu0 0.0
    %1169 = vmatprep.subr.mxu0 0.0
    %1170 = vmatpush2.msra.mxu0 0.0
    %1171 = vmatprep.subr.mxu0 0.0
    %1172 = vmatpush2.msra.mxu0 0.0
    %1173 = vmatprep.subr.mxu0 0.0
    %1174 = vmatpush2.msra.mxu0 0.0
    %1175 = vmatprep.subr.mxu0 0.0
    %1176 = vmatpush2.msra.mxu0 0.0
    %1177 = vmatprep.subr.mxu0 0.0
    %1178 = vmatpush2.msra.mxu0 0.0
    %1179 = vmatprep.subr.mxu0 0.0
    %1180 = vmatpush2.msra.mxu0 0.0
    %1181 = vmatprep.subr.mxu0 0.0
    %1182 = vmatpush2.msra.mxu0 0.0
    %1183 = vmatprep.subr.mxu0 0.0
    %1184 = vmatpush2.msra.mxu0 0.0
    %1185 = vmatprep.subr.mxu0 0.0
    %1186 = vmatpush2.msra.mxu0 0.0
    %1187 = vmatprep.subr.mxu0 0.0
    %1188 = vmatpush2.msra.mxu0 0.0
    %1189 = vmatprep.subr.mxu0 0.0
    %1190 = vmatpush2.msra.mxu0 0.0
    %1191 = vmatprep.mubr.f32.mxu0 0.0
    %1192 = vmatmul.mubr.f32.gmra.mxu0 %v808
    %v1193 = vpop.f32.mrf.mxu0
    %v1194 = vadd.f32 0.0, %v1193
    %v1195 = vpop.f32.mrf.mxu0
    %1196 = vdwg.mxu0
    %v1197 = vadd.f32 %v359, %v1194
    %v1198 = vmul.f32 %v1197, 0.5
    %v1199 = vtanh.pop %v1198
    %v1200 = vmul.f32 %v1199, 0.5
    %v1201 = vadd.f32 %v1200, 0.5
    %v1202 = vtanh.pop %v1197
    %v1203 = vmul.f32 %v1201, %v798
    %1205 = vrot.lane.b32.xlu0 %v1202, 64
    %v1206 = vpop.permute.xlu0 %1205
    %v1208 = vmul.f32 %v1201, %v1206
    %1210 = vrot.lane.b32.xlu0 %v1208, 32
    %v1211 = vpop.permute.xlu0 %1210
    %v1213 = vadd.f32 %v1203, %v1211
    %v1214 = vtanh.pop %v1213
    %1216 = vrot.lane.b32.xlu0 %v1214, 64
    %v1217 = vpop.permute.xlu0 %1216
    %v1219 = vmul.f32 %v1201, %v1217
    %1221 = vrot.lane.b32.xlu0 %v1219, 32
    %v1222 = vpop.permute.xlu0 %1221
    %v1223 = vsel %vm437, %v1222, 0
    %1225 = vmatprep.subr.mxu0 0.0
    %1226 = vmatpush1.msra.mxu0 0.0
    %1227 = vmatprep.subr.mxu0 0.0
    %1228 = vmatpush1.msra.mxu0 0.0
    %1229 = vmatprep.subr.mxu0 0.0
    %1230 = vmatpush1.msra.mxu0 0.0
    %1231 = vmatprep.subr.mxu0 0.0
    %1232 = vmatpush1.msra.mxu0 0.0
    %1233 = vmatprep.subr.mxu0 0.0
    %1234 = vmatpush1.msra.mxu0 0.0
    %1235 = vmatprep.subr.mxu0 0.0
    %1236 = vmatpush1.msra.mxu0 0.0
    %1237 = vmatprep.subr.mxu0 0.0
    %1238 = vmatpush1.msra.mxu0 0.0
    %1239 = vmatprep.subr.mxu0 0.0
    %1240 = vmatpush1.msra.mxu0 0.0
    %1241 = vmatprep.subr.mxu0 0.0
    %1242 = vmatpush1.msra.mxu0 0.0
    %1243 = vmatprep.subr.mxu0 0.0
    %1244 = vmatpush1.msra.mxu0 0.0
    %1245 = vmatprep.subr.mxu0 0.0
    %1246 = vmatpush1.msra.mxu0 0.0
    %1247 = vmatprep.subr.mxu0 0.0
    %1248 = vmatpush1.msra.mxu0 0.0
    %1249 = vmatprep.subr.mxu0 0.0
    %1250 = vmatpush1.msra.mxu0 %v116
    %1251 = vmatprep.subr.mxu0 0.0
    %1252 = vmatpush1.msra.mxu0 %v115
    %1253 = vmatprep.subr.mxu0 0.0
    %1254 = vmatpush1.msra.mxu0 %v114
    %1255 = vmatprep.subr.mxu0 0.0
    %1256 = vmatpush1.msra.mxu0 %v113
    %1257 = vmatprep.subr.mxu0 0.0
    %1258 = vmatpush2.msra.mxu0 0.0
    %1259 = vmatprep.subr.mxu0 0.0
    %1260 = vmatpush2.msra.mxu0 0.0
    %1261 = vmatprep.subr.mxu0 0.0
    %1262 = vmatpush2.msra.mxu0 0.0
    %1263 = vmatprep.subr.mxu0 0.0
    %1264 = vmatpush2.msra.mxu0 0.0
    %1265 = vmatprep.subr.mxu0 0.0
    %1266 = vmatpush2.msra.mxu0 0.0
    %1267 = vmatprep.subr.mxu0 0.0
    %1268 = vmatpush2.msra.mxu0 0.0
    %1269 = vmatprep.subr.mxu0 0.0
    %1270 = vmatpush2.msra.mxu0 0.0
    %1271 = vmatprep.subr.mxu0 0.0
    %1272 = vmatpush2.msra.mxu0 0.0
    %1273 = vmatprep.subr.mxu0 0.0
    %1274 = vmatpush2.msra.mxu0 0.0
    %1275 = vmatprep.subr.mxu0 0.0
    %1276 = vmatpush2.msra.mxu0 0.0
    %1277 = vmatprep.subr.mxu0 0.0
    %1278 = vmatpush2.msra.mxu0 0.0
    %1279 = vmatprep.subr.mxu0 0.0
    %1280 = vmatpush2.msra.mxu0 0.0
    %1281 = vmatprep.subr.mxu0 0.0
    %1282 = vmatpush2.msra.mxu0 0.0
    %1283 = vmatprep.subr.mxu0 0.0
    %1284 = vmatpush2.msra.mxu0 0.0
    %1285 = vmatprep.subr.mxu0 0.0
    %1286 = vmatpush2.msra.mxu0 0.0
    %1287 = vmatprep.subr.mxu0 0.0
    %1288 = vmatpush2.msra.mxu0 0.0
    %1289 = vmatprep.mubr.f32.mxu0 0.0
    %1290 = vmatmul.mubr.f32.gmra.mxu0 %v1223
    %v1291 = vpop.f32.mrf.mxu0
    %v1292 = vadd.f32 %v538, %v1291
    %v1293 = vpop.f32.mrf.mxu0
    %1294 = vdwg.mxu0
    %1295 = vmatprep.subr.mxu0 0.0
    %1296 = vmatpush1.msra.mxu0 0.0
    %1297 = vmatprep.subr.mxu0 0.0
    %1298 = vmatpush1.msra.mxu0 0.0
    %1299 = vmatprep.subr.mxu0 0.0
    %1300 = vmatpush1.msra.mxu0 0.0
    %1301 = vmatprep.subr.mxu0 0.0
    %1302 = vmatpush1.msra.mxu0 0.0
    %1303 = vmatprep.subr.mxu0 0.0
    %1304 = vmatpush1.msra.mxu0 0.0
    %1305 = vmatprep.subr.mxu0 0.0
    %1306 = vmatpush1.msra.mxu0 0.0
    %1307 = vmatprep.subr.mxu0 0.0
    %1308 = vmatpush1.msra.mxu0 0.0
    %1309 = vmatprep.subr.mxu0 0.0
    %1310 = vmatpush1.msra.mxu0 0.0
    %1311 = vmatprep.subr.mxu0 0.0
    %1312 = vmatpush1.msra.mxu0 0.0
    %1313 = vmatprep.subr.mxu0 0.0
    %1314 = vmatpush1.msra.mxu0 0.0
    %1315 = vmatprep.subr.mxu0 0.0
    %1316 = vmatpush1.msra.mxu0 0.0
    %1317 = vmatprep.subr.mxu0 0.0
    %1318 = vmatpush1.msra.mxu0 0.0
    %1319 = vmatprep.subr.mxu0 0.0
    %1320 = vmatpush1.msra.mxu0 %v124
    %1321 = vmatprep.subr.mxu0 0.0
    %1322 = vmatpush1.msra.mxu0 %v123
    %1323 = vmatprep.subr.mxu0 0.0
    %1324 = vmatpush1.msra.mxu0 %v122
    %1325 = vmatprep.subr.mxu0 0.0
    %1326 = vmatpush1.msra.mxu0 %v121
    %1327 = vmatprep.subr.mxu0 0.0
    %1328 = vmatpush2.msra.mxu0 0.0
    %1329 = vmatprep.subr.mxu0 0.0
    %1330 = vmatpush2.msra.mxu0 0.0
    %1331 = vmatprep.subr.mxu0 0.0
    %1332 = vmatpush2.msra.mxu0 0.0
    %1333 = vmatprep.subr.mxu0 0.0
    %1334 = vmatpush2.msra.mxu0 0.0
    %1335 = vmatprep.subr.mxu0 0.0
    %1336 = vmatpush2.msra.mxu0 0.0
    %1337 = vmatprep.subr.mxu0 0.0
    %1338 = vmatpush2.msra.mxu0 0.0
    %1339 = vmatprep.subr.mxu0 0.0
    %1340 = vmatpush2.msra.mxu0 0.0
    %1341 = vmatprep.subr.mxu0 0.0
    %1342 = vmatpush2.msra.mxu0 0.0
    %1343 = vmatprep.subr.mxu0 0.0
    %1344 = vmatpush2.msra.mxu0 0.0
    %1345 = vmatprep.subr.mxu0 0.0
    %1346 = vmatpush2.msra.mxu0 0.0
    %1347 = vmatprep.subr.mxu0 0.0
    %1348 = vmatpush2.msra.mxu0 0.0
    %1349 = vmatprep.subr.mxu0 0.0
    %1350 = vmatpush2.msra.mxu0 0.0
    %1351 = vmatprep.subr.mxu0 0.0
    %1352 = vmatpush2.msra.mxu0 0.0
    %1353 = vmatprep.subr.mxu0 0.0
    %1354 = vmatpush2.msra.mxu0 0.0
    %1355 = vmatprep.subr.mxu0 0.0
    %1356 = vmatpush2.msra.mxu0 0.0
    %1357 = vmatprep.subr.mxu0 0.0
    %1358 = vmatpush2.msra.mxu0 0.0
    %1359 = vmatprep.mubr.f32.mxu0 0.0
    %1360 = vmatmul.mubr.f32.gmra.mxu0 %v985
    %v1361 = vpop.f32.mrf.mxu0
    %v1362 = vadd.f32 0.0, %v1361
    %v1363 = vpop.f32.mrf.mxu0
    %1364 = vdwg.mxu0
    %v1365 = vadd.f32 %v1292, %v1362
    %v1366 = vmul.f32 %v1365, 0.5
    %v1367 = vtanh.pop %v1366
    %v1368 = vmul.f32 %v1367, 0.5
    %v1369 = vadd.f32 %v1368, 0.5
    %v1370 = vtanh.pop %v1365
    %v1371 = vmul.f32 %v1369, %v971
    %1373 = vrot.lane.b32.xlu0 %v1370, 64
    %v1374 = vpop.permute.xlu0 %1373
    %v1376 = vmul.f32 %v1369, %v1374
    %1378 = vrot.lane.b32.xlu0 %v1376, 32
    %v1379 = vpop.permute.xlu0 %1378
    %v1381 = vadd.f32 %v1371, %v1379
    %v1382 = vtanh.pop %v1381
    %1384 = vrot.lane.b32.xlu0 %v1382, 64
    %v1385 = vpop.permute.xlu0 %1384
    %v1387 = vmul.f32 %v1369, %v1385
    %v1388 = vld [vmem:[#allocation7 + $0x40] sm:$0xff]
    %v1389 = vld [vmem:[#allocation7 + $0x48] sm:$0xff]
    %v1390 = vld [vmem:[#allocation7 + $0x50] sm:$0xff]
    %v1391 = vld [vmem:[#allocation7 + $0x58] sm:$0xff]
    %1393 = vrot.lane.b32.xlu0 %v1387, 32
    %v1394 = vpop.permute.xlu0 %1393
    %v1395 = vsel %vm437, %v1394, 0
    %1397 = vmatprep.subr.mxu0 0.0
    %1398 = vmatpush1.msra.mxu0 0.0
    %1399 = vmatprep.subr.mxu0 0.0
    %1400 = vmatpush1.msra.mxu0 0.0
    %1401 = vmatprep.subr.mxu0 0.0
    %1402 = vmatpush1.msra.mxu0 0.0
    %1403 = vmatprep.subr.mxu0 0.0
    %1404 = vmatpush1.msra.mxu0 0.0
    %1405 = vmatprep.subr.mxu0 0.0
    %1406 = vmatpush1.msra.mxu0 0.0
    %1407 = vmatprep.subr.mxu0 0.0
    %1408 = vmatpush1.msra.mxu0 0.0
    %1409 = vmatprep.subr.mxu0 0.0
    %1410 = vmatpush1.msra.mxu0 0.0
    %1411 = vmatprep.subr.mxu0 0.0
    %1412 = vmatpush1.msra.mxu0 0.0
    %1413 = vmatprep.subr.mxu0 0.0
    %1414 = vmatpush1.msra.mxu0 0.0
    %1415 = vmatprep.subr.mxu0 0.0
    %1416 = vmatpush1.msra.mxu0 0.0
    %1417 = vmatprep.subr.mxu0 0.0
    %1418 = vmatpush1.msra.mxu0 0.0
    %1419 = vmatprep.subr.mxu0 0.0
    %1420 = vmatpush1.msra.mxu0 0.0
    %1421 = vmatprep.subr.mxu0 0.0
    %1422 = vmatpush1.msra.mxu0 %v1391
    %1423 = vmatprep.subr.mxu0 0.0
    %1424 = vmatpush1.msra.mxu0 %v1390
    %1425 = vmatprep.subr.mxu0 0.0
    %1426 = vmatpush1.msra.mxu0 %v1389
    %1427 = vmatprep.subr.mxu0 0.0
    %1428 = vmatpush1.msra.mxu0 %v1388
    %1429 = vmatprep.subr.mxu0 0.0
    %1430 = vmatpush2.msra.mxu0 0.0
    %1431 = vmatprep.subr.mxu0 0.0
    %1432 = vmatpush2.msra.mxu0 0.0
    %1433 = vmatprep.subr.mxu0 0.0
    %1434 = vmatpush2.msra.mxu0 0.0
    %1435 = vmatprep.subr.mxu0 0.0
    %1436 = vmatpush2.msra.mxu0 0.0
    %1437 = vmatprep.subr.mxu0 0.0
    %1438 = vmatpush2.msra.mxu0 0.0
    %1439 = vmatprep.subr.mxu0 0.0
    %1440 = vmatpush2.msra.mxu0 0.0
    %1441 = vmatprep.subr.mxu0 0.0
    %1442 = vmatpush2.msra.mxu0 0.0
    %1443 = vmatprep.subr.mxu0 0.0
    %1444 = vmatpush2.msra.mxu0 0.0
    %1445 = vmatprep.subr.mxu0 0.0
    %1446 = vmatpush2.msra.mxu0 0.0
    %1447 = vmatprep.subr.mxu0 0.0
    %1448 = vmatpush2.msra.mxu0 0.0
    %1449 = vmatprep.subr.mxu0 0.0
    %1450 = vmatpush2.msra.mxu0 0.0
    %1451 = vmatprep.subr.mxu0 0.0
    %1452 = vmatpush2.msra.mxu0 0.0
    %1453 = vmatprep.subr.mxu0 0.0
    %1454 = vmatpush2.msra.mxu0 0.0
    %1455 = vmatprep.subr.mxu0 0.0
    %1456 = vmatpush2.msra.mxu0 0.0
    %1457 = vmatprep.subr.mxu0 0.0
    %1458 = vmatpush2.msra.mxu0 0.0
    %1459 = vmatprep.subr.mxu0 0.0
    %1460 = vmatpush2.msra.mxu0 0.0
    %1461 = vmatprep.mubr.f32.mxu0 0.0
    %1462 = vmatmul.mubr.f32.gmra.mxu0 %v1395
    %v1463 = vpop.f32.mrf.mxu0
    %v1464 = vadd.f32 0.0, %v1463
    %v1465 = vpop.f32.mrf.mxu0
    %1466 = vdwg.mxu0
    %v1467 = vadd.f32 %v1124, %v1464
    %1468 = vmatprep.subr.mxu0 0.0
    %1469 = vmatpush1.msra.mxu0 0.0
    %1470 = vmatprep.subr.mxu0 0.0
    %1471 = vmatpush1.msra.mxu0 0.0
    %1472 = vmatprep.subr.mxu0 0.0
    %1473 = vmatpush1.msra.mxu0 0.0
    %1474 = vmatprep.subr.mxu0 0.0
    %1475 = vmatpush1.msra.mxu0 0.0
    %1476 = vmatprep.subr.mxu0 0.0
    %1477 = vmatpush1.msra.mxu0 0.0
    %1478 = vmatprep.subr.mxu0 0.0
    %1479 = vmatpush1.msra.mxu0 0.0
    %1480 = vmatprep.subr.mxu0 0.0
    %1481 = vmatpush1.msra.mxu0 0.0
    %1482 = vmatprep.subr.mxu0 0.0
    %1483 = vmatpush1.msra.mxu0 0.0
    %1484 = vmatprep.subr.mxu0 0.0
    %1485 = vmatpush1.msra.mxu0 0.0
    %1486 = vmatprep.subr.mxu0 0.0
    %1487 = vmatpush1.msra.mxu0 0.0
    %1488 = vmatprep.subr.mxu0 0.0
    %1489 = vmatpush1.msra.mxu0 0.0
    %1490 = vmatprep.subr.mxu0 0.0
    %1491 = vmatpush1.msra.mxu0 0.0
    %1492 = vmatprep.subr.mxu0 0.0
    %1493 = vmatpush1.msra.mxu0 %v120
    %1494 = vmatprep.subr.mxu0 0.0
    %1495 = vmatpush1.msra.mxu0 %v119
    %1496 = vmatprep.subr.mxu0 0.0
    %1497 = vmatpush1.msra.mxu0 %v118
    %1498 = vmatprep.subr.mxu0 0.0
    %1499 = vmatpush1.msra.mxu0 %v117
    %1500 = vmatprep.subr.mxu0 0.0
    %1501 = vmatpush2.msra.mxu0 0.0
    %1502 = vmatprep.subr.mxu0 0.0
    %1503 = vmatpush2.msra.mxu0 0.0
    %1504 = vmatprep.subr.mxu0 0.0
    %1505 = vmatpush2.msra.mxu0 0.0
    %1506 = vmatprep.subr.mxu0 0.0
    %1507 = vmatpush2.msra.mxu0 0.0
    %1508 = vmatprep.subr.mxu0 0.0
    %1509 = vmatpush2.msra.mxu0 0.0
    %1510 = vmatprep.subr.mxu0 0.0
    %1511 = vmatpush2.msra.mxu0 0.0
    %1512 = vmatprep.subr.mxu0 0.0
    %1513 = vmatpush2.msra.mxu0 0.0
    %1514 = vmatprep.subr.mxu0 0.0
    %1515 = vmatpush2.msra.mxu0 0.0
    %1516 = vmatprep.subr.mxu0 0.0
    %1517 = vmatpush2.msra.mxu0 0.0
    %1518 = vmatprep.subr.mxu0 0.0
    %1519 = vmatpush2.msra.mxu0 0.0
    %1520 = vmatprep.subr.mxu0 0.0
    %1521 = vmatpush2.msra.mxu0 0.0
    %1522 = vmatprep.subr.mxu0 0.0
    %1523 = vmatpush2.msra.mxu0 0.0
    %1524 = vmatprep.subr.mxu0 0.0
    %1525 = vmatpush2.msra.mxu0 0.0
    %1526 = vmatprep.subr.mxu0 0.0
    %1527 = vmatpush2.msra.mxu0 0.0
    %1528 = vmatprep.subr.mxu0 0.0
    %1529 = vmatpush2.msra.mxu0 0.0
    %1530 = vmatprep.subr.mxu0 0.0
    %1531 = vmatpush2.msra.mxu0 0.0
    %1532 = vmatprep.mubr.f32.mxu0 0.0
    %1533 = vmatmul.mubr.f32.gmra.mxu0 %v1223
    %v1534 = vpop.f32.mrf.mxu0
    %v1535 = vadd.f32 0.0, %v1534
    %v1536 = vpop.f32.mrf.mxu0
    %1537 = vdwg.mxu0
    %v1538 = vadd.f32 %v434, %v1535
    %v1539 = vmul.f32 %v1538, 0.5
    %v1540 = vtanh.pop %v1539
    %v1541 = vmul.f32 %v1540, 0.5
    %v1542 = vadd.f32 %v1541, 0.5
    %v1543 = vtanh.pop %v1538
    %v1544 = vmul.f32 %v1542, %v1213
    %1546 = vrot.lane.b32.xlu0 %v1543, 64
    %v1547 = vpop.permute.xlu0 %1546
    %v1549 = vmul.f32 %v1542, %v1547
    %1551 = vrot.lane.b32.xlu0 %v1549, 32
    %v1552 = vpop.permute.xlu0 %1551
    %v1554 = vadd.f32 %v1544, %v1552
    %v1555 = vtanh.pop %v1554
    %1557 = vrot.lane.b32.xlu0 %v1555, 64
    %v1558 = vpop.permute.xlu0 %1557
    %v1560 = vmul.f32 %v1542, %v1558
    %1562 = vrot.lane.b32.xlu0 %v1560, 32
    %v1563 = vpop.permute.xlu0 %1562
    %v1564 = vsel %vm437, %v1563, 0
    %1566 = vmatprep.subr.mxu0 0.0
    %1567 = vmatpush1.msra.mxu0 0.0
    %1568 = vmatprep.subr.mxu0 0.0
    %1569 = vmatpush1.msra.mxu0 0.0
    %1570 = vmatprep.subr.mxu0 0.0
    %1571 = vmatpush1.msra.mxu0 0.0
    %1572 = vmatprep.subr.mxu0 0.0
    %1573 = vmatpush1.msra.mxu0 0.0
    %1574 = vmatprep.subr.mxu0 0.0
    %1575 = vmatpush1.msra.mxu0 0.0
    %1576 = vmatprep.subr.mxu0 0.0
    %1577 = vmatpush1.msra.mxu0 0.0
    %1578 = vmatprep.subr.mxu0 0.0
    %1579 = vmatpush1.msra.mxu0 0.0
    %1580 = vmatprep.subr.mxu0 0.0
    %1581 = vmatpush1.msra.mxu0 0.0
    %1582 = vmatprep.subr.mxu0 0.0
    %1583 = vmatpush1.msra.mxu0 0.0
    %1584 = vmatprep.subr.mxu0 0.0
    %1585 = vmatpush1.msra.mxu0 0.0
    %1586 = vmatprep.subr.mxu0 0.0
    %1587 = vmatpush1.msra.mxu0 0.0
    %1588 = vmatprep.subr.mxu0 0.0
    %1589 = vmatpush1.msra.mxu0 0.0
    %1590 = vmatprep.subr.mxu0 0.0
    %1591 = vmatpush1.msra.mxu0 %v116
    %1592 = vmatprep.subr.mxu0 0.0
    %1593 = vmatpush1.msra.mxu0 %v115
    %1594 = vmatprep.subr.mxu0 0.0
    %1595 = vmatpush1.msra.mxu0 %v114
    %1596 = vmatprep.subr.mxu0 0.0
    %1597 = vmatpush1.msra.mxu0 %v113
    %1598 = vmatprep.subr.mxu0 0.0
    %1599 = vmatpush2.msra.mxu0 0.0
    %1600 = vmatprep.subr.mxu0 0.0
    %1601 = vmatpush2.msra.mxu0 0.0
    %1602 = vmatprep.subr.mxu0 0.0
    %1603 = vmatpush2.msra.mxu0 0.0
    %1604 = vmatprep.subr.mxu0 0.0
    %1605 = vmatpush2.msra.mxu0 0.0
    %1606 = vmatprep.subr.mxu0 0.0
    %1607 = vmatpush2.msra.mxu0 0.0
    %1608 = vmatprep.subr.mxu0 0.0
    %1609 = vmatpush2.msra.mxu0 0.0
    %1610 = vmatprep.subr.mxu0 0.0
    %1611 = vmatpush2.msra.mxu0 0.0
    %1612 = vmatprep.subr.mxu0 0.0
    %1613 = vmatpush2.msra.mxu0 0.0
    %1614 = vmatprep.subr.mxu0 0.0
    %1615 = vmatpush2.msra.mxu0 0.0
    %1616 = vmatprep.subr.mxu0 0.0
    %1617 = vmatpush2.msra.mxu0 0.0
    %1618 = vmatprep.subr.mxu0 0.0
    %1619 = vmatpush2.msra.mxu0 0.0
    %1620 = vmatprep.subr.mxu0 0.0
    %1621 = vmatpush2.msra.mxu0 0.0
    %1622 = vmatprep.subr.mxu0 0.0
    %1623 = vmatpush2.msra.mxu0 0.0
    %1624 = vmatprep.subr.mxu0 0.0
    %1625 = vmatpush2.msra.mxu0 0.0
    %1626 = vmatprep.subr.mxu0 0.0
    %1627 = vmatpush2.msra.mxu0 0.0
    %1628 = vmatprep.subr.mxu0 0.0
    %1629 = vmatpush2.msra.mxu0 0.0
    %1630 = vmatprep.mubr.f32.mxu0 0.0
    %1631 = vmatmul.mubr.f32.gmra.mxu0 %v1564
    %v1632 = vpop.f32.mrf.mxu0
    %v1633 = vadd.f32 %v538, %v1632
    %v1634 = vpop.f32.mrf.mxu0
    %1635 = vdwg.mxu0
    %1636 = vmatprep.subr.mxu0 0.0
    %1637 = vmatpush1.msra.mxu0 0.0
    %1638 = vmatprep.subr.mxu0 0.0
    %1639 = vmatpush1.msra.mxu0 0.0
    %1640 = vmatprep.subr.mxu0 0.0
    %1641 = vmatpush1.msra.mxu0 0.0
    %1642 = vmatprep.subr.mxu0 0.0
    %1643 = vmatpush1.msra.mxu0 0.0
    %1644 = vmatprep.subr.mxu0 0.0
    %1645 = vmatpush1.msra.mxu0 0.0
    %1646 = vmatprep.subr.mxu0 0.0
    %1647 = vmatpush1.msra.mxu0 0.0
    %1648 = vmatprep.subr.mxu0 0.0
    %1649 = vmatpush1.msra.mxu0 0.0
    %1650 = vmatprep.subr.mxu0 0.0
    %1651 = vmatpush1.msra.mxu0 0.0
    %1652 = vmatprep.subr.mxu0 0.0
    %1653 = vmatpush1.msra.mxu0 0.0
    %1654 = vmatprep.subr.mxu0 0.0
    %1655 = vmatpush1.msra.mxu0 0.0
    %1656 = vmatprep.subr.mxu0 0.0
    %1657 = vmatpush1.msra.mxu0 0.0
    %1658 = vmatprep.subr.mxu0 0.0
    %1659 = vmatpush1.msra.mxu0 0.0
    %1660 = vmatprep.subr.mxu0 0.0
    %1661 = vmatpush1.msra.mxu0 %v124
    %1662 = vmatprep.subr.mxu0 0.0
    %1663 = vmatpush1.msra.mxu0 %v123
    %1664 = vmatprep.subr.mxu0 0.0
    %1665 = vmatpush1.msra.mxu0 %v122
    %1666 = vmatprep.subr.mxu0 0.0
    %1667 = vmatpush1.msra.mxu0 %v121
    %1668 = vmatprep.subr.mxu0 0.0
    %1669 = vmatpush2.msra.mxu0 0.0
    %1670 = vmatprep.subr.mxu0 0.0
    %1671 = vmatpush2.msra.mxu0 0.0
    %1672 = vmatprep.subr.mxu0 0.0
    %1673 = vmatpush2.msra.mxu0 0.0
    %1674 = vmatprep.subr.mxu0 0.0
    %1675 = vmatpush2.msra.mxu0 0.0
    %1676 = vmatprep.subr.mxu0 0.0
    %1677 = vmatpush2.msra.mxu0 0.0
    %1678 = vmatprep.subr.mxu0 0.0
    %1679 = vmatpush2.msra.mxu0 0.0
    %1680 = vmatprep.subr.mxu0 0.0
    %1681 = vmatpush2.msra.mxu0 0.0
    %1682 = vmatprep.subr.mxu0 0.0
    %1683 = vmatpush2.msra.mxu0 0.0
    %1684 = vmatprep.subr.mxu0 0.0
    %1685 = vmatpush2.msra.mxu0 0.0
    %1686 = vmatprep.subr.mxu0 0.0
    %1687 = vmatpush2.msra.mxu0 0.0
    %1688 = vmatprep.subr.mxu0 0.0
    %1689 = vmatpush2.msra.mxu0 0.0
    %1690 = vmatprep.subr.mxu0 0.0
    %1691 = vmatpush2.msra.mxu0 0.0
    %1692 = vmatprep.subr.mxu0 0.0
    %1693 = vmatpush2.msra.mxu0 0.0
    %1694 = vmatprep.subr.mxu0 0.0
    %1695 = vmatpush2.msra.mxu0 0.0
    %1696 = vmatprep.subr.mxu0 0.0
    %1697 = vmatpush2.msra.mxu0 0.0
    %1698 = vmatprep.subr.mxu0 0.0
    %1699 = vmatpush2.msra.mxu0 0.0
    %1700 = vmatprep.mubr.f32.mxu0 0.0
    %1701 = vmatmul.mubr.f32.gmra.mxu0 %v1395
    %v1702 = vpop.f32.mrf.mxu0
    %v1703 = vadd.f32 0.0, %v1702
    %v1704 = vpop.f32.mrf.mxu0
    %1705 = vdwg.mxu0
    %v1706 = vadd.f32 %v1633, %v1703
    %v1707 = vmul.f32 %v1706, 0.5
    %v1708 = vtanh.pop %v1707
    %v1709 = vmul.f32 %v1708, 0.5
    %v1710 = vadd.f32 %v1709, 0.5
    %v1711 = vtanh.pop %v1706
    %v1712 = vmul.f32 %v1710, %v1381
    %1714 = vrot.lane.b32.xlu0 %v1711, 64
    %v1715 = vpop.permute.xlu0 %1714
    %v1717 = vmul.f32 %v1710, %v1715
    %1719 = vrot.lane.b32.xlu0 %v1717, 32
    %v1720 = vpop.permute.xlu0 %1719
    %v1722 = vadd.f32 %v1712, %v1720
    %v1723 = vtanh.pop %v1722
    %1725 = vrot.lane.b32.xlu0 %v1723, 64
    %v1726 = vpop.permute.xlu0 %1725
    %v1728 = vmul.f32 %v1710, %v1726
    %v1729 = vld [vmem:[#allocation7 + $0x60] sm:$0xff]
    %v1730 = vld [vmem:[#allocation7 + $0x68] sm:$0xff]
    %v1731 = vld [vmem:[#allocation7 + $0x70] sm:$0xff]
    %v1732 = vld [vmem:[#allocation7 + $0x78] sm:$0xff]
    %1734 = vrot.lane.b32.xlu0 %v1728, 32
    %v1735 = vpop.permute.xlu0 %1734
    %v1736 = vsel %vm437, %v1735, 0
    %1738 = vmatprep.subr.mxu0 0.0
    %1739 = vmatpush1.msra.mxu0 0.0
    %1740 = vmatprep.subr.mxu0 0.0
    %1741 = vmatpush1.msra.mxu0 0.0
    %1742 = vmatprep.subr.mxu0 0.0
    %1743 = vmatpush1.msra.mxu0 0.0
    %1744 = vmatprep.subr.mxu0 0.0
    %1745 = vmatpush1.msra.mxu0 0.0
    %1746 = vmatprep.subr.mxu0 0.0
    %1747 = vmatpush1.msra.mxu0 0.0
    %1748 = vmatprep.subr.mxu0 0.0
    %1749 = vmatpush1.msra.mxu0 0.0
    %1750 = vmatprep.subr.mxu0 0.0
    %1751 = vmatpush1.msra.mxu0 0.0
    %1752 = vmatprep.subr.mxu0 0.0
    %1753 = vmatpush1.msra.mxu0 0.0
    %1754 = vmatprep.subr.mxu0 0.0
    %1755 = vmatpush1.msra.mxu0 0.0
    %1756 = vmatprep.subr.mxu0 0.0
    %1757 = vmatpush1.msra.mxu0 0.0
    %1758 = vmatprep.subr.mxu0 0.0
    %1759 = vmatpush1.msra.mxu0 0.0
    %1760 = vmatprep.subr.mxu0 0.0
    %1761 = vmatpush1.msra.mxu0 0.0
    %1762 = vmatprep.subr.mxu0 0.0
    %1763 = vmatpush1.msra.mxu0 %v1732
    %1764 = vmatprep.subr.mxu0 0.0
    %1765 = vmatpush1.msra.mxu0 %v1731
    %1766 = vmatprep.subr.mxu0 0.0
    %1767 = vmatpush1.msra.mxu0 %v1730
    %1768 = vmatprep.subr.mxu0 0.0
    %1769 = vmatpush1.msra.mxu0 %v1729
    %1770 = vmatprep.subr.mxu0 0.0
    %1771 = vmatpush2.msra.mxu0 0.0
    %1772 = vmatprep.subr.mxu0 0.0
    %1773 = vmatpush2.msra.mxu0 0.0
    %1774 = vmatprep.subr.mxu0 0.0
    %1775 = vmatpush2.msra.mxu0 0.0
    %1776 = vmatprep.subr.mxu0 0.0
    %1777 = vmatpush2.msra.mxu0 0.0
    %1778 = vmatprep.subr.mxu0 0.0
    %1779 = vmatpush2.msra.mxu0 0.0
    %1780 = vmatprep.subr.mxu0 0.0
    %1781 = vmatpush2.msra.mxu0 0.0
    %1782 = vmatprep.subr.mxu0 0.0
    %1783 = vmatpush2.msra.mxu0 0.0
    %1784 = vmatprep.subr.mxu0 0.0
    %1785 = vmatpush2.msra.mxu0 0.0
    %1786 = vmatprep.subr.mxu0 0.0
    %1787 = vmatpush2.msra.mxu0 0.0
    %1788 = vmatprep.subr.mxu0 0.0
    %1789 = vmatpush2.msra.mxu0 0.0
    %1790 = vmatprep.subr.mxu0 0.0
    %1791 = vmatpush2.msra.mxu0 0.0
    %1792 = vmatprep.subr.mxu0 0.0
    %1793 = vmatpush2.msra.mxu0 0.0
    %1794 = vmatprep.subr.mxu0 0.0
    %1795 = vmatpush2.msra.mxu0 0.0
    %1796 = vmatprep.subr.mxu0 0.0
    %1797 = vmatpush2.msra.mxu0 0.0
    %1798 = vmatprep.subr.mxu0 0.0
    %1799 = vmatpush2.msra.mxu0 0.0
    %1800 = vmatprep.subr.mxu0 0.0
    %1801 = vmatpush2.msra.mxu0 0.0
    %1802 = vmatprep.mubr.f32.mxu0 0.0
    %1803 = vmatmul.mubr.f32.gmra.mxu0 %v1736
    %v1804 = vpop.f32.mrf.mxu0
    %v1805 = vadd.f32 0.0, %v1804
    %v1806 = vpop.f32.mrf.mxu0
    %1807 = vdwg.mxu0
    %v1808 = vadd.f32 %v1467, %v1805
    %v1809 = vld [vmem:[%s8] sm:$0x1]
    %v1811 = vlaneseq
    %v1812 = vshrl.u32 %v1811, 7
    %v1813 = vsub.s32 0, %v1812
    %v1814 = vrot.slane %v1809, %v1813
    %v1816 = vadd.f32 %v1808, %v1814
    %v1817 = vmax.f32 %v1816, 0.0
    %v1818 = vld [vmem:[#allocation9] sm:$0xff]
    %v1819 = vld [vmem:[#allocation9 + $0x8] sm:$0xff]
    %v1820 = vld [vmem:[#allocation9 + $0x10] sm:$0xff]
    %v1821 = vld [vmem:[#allocation9 + $0x18] sm:$0xff]
    %v1822 = vld [vmem:[#allocation9 + $0x20] sm:$0xff]
    %v1823 = vld [vmem:[#allocation9 + $0x28] sm:$0xff]
    %v1824 = vld [vmem:[#allocation9 + $0x30] sm:$0xff]
    %v1825 = vld [vmem:[#allocation9 + $0x38] sm:$0xff]
    %v1826 = vld [vmem:[#allocation9 + $0x40] sm:$0xff]
    %v1827 = vld [vmem:[#allocation9 + $0x48] sm:$0xff]
    %v1828 = vld [vmem:[#allocation9 + $0x50] sm:$0xff]
    %v1829 = vld [vmem:[#allocation9 + $0x58] sm:$0xff]
    %v1830 = vld [vmem:[#allocation9 + $0x60] sm:$0xff]
    %v1831 = vld [vmem:[#allocation9 + $0x68] sm:$0xff]
    %v1832 = vld [vmem:[#allocation9 + $0x70] sm:$0xff]
    %v1833 = vld [vmem:[#allocation9 + $0x78] sm:$0xff]
    %v1834 = vld [vmem:[%s10] sm:$0x1]
    %v1836 = vlaneseq
    %v1837 = vshrl.u32 %v1836, 7
    %v1838 = vsub.s32 0, %v1837
    %v1839 = vrot.slane %v1834, %v1838
    %1841 = vmatprep.subr.mxu0 0.0
    %1842 = vmatpush1.msra.mxu0 %v1833
    %1843 = vmatprep.subr.mxu0 0.0
    %1844 = vmatpush1.msra.mxu0 %v1832
    %1845 = vmatprep.subr.mxu0 0.0
    %1846 = vmatpush1.msra.mxu0 %v1831
    %1847 = vmatprep.subr.mxu0 0.0
    %1848 = vmatpush1.msra.mxu0 %v1830
    %1849 = vmatprep.subr.mxu0 0.0
    %1850 = vmatpush1.msra.mxu0 %v1829
    %1851 = vmatprep.subr.mxu0 0.0
    %1852 = vmatpush1.msra.mxu0 %v1828
    %1853 = vmatprep.subr.mxu0 0.0
    %1854 = vmatpush1.msra.mxu0 %v1827
    %1855 = vmatprep.subr.mxu0 0.0
    %1856 = vmatpush1.msra.mxu0 %v1826
    %1857 = vmatprep.subr.mxu0 0.0
    %1858 = vmatpush1.msra.mxu0 %v1825
    %1859 = vmatprep.subr.mxu0 0.0
    %1860 = vmatpush1.msra.mxu0 %v1824
    %1861 = vmatprep.subr.mxu0 0.0
    %1862 = vmatpush1.msra.mxu0 %v1823
    %1863 = vmatprep.subr.mxu0 0.0
    %1864 = vmatpush1.msra.mxu0 %v1822
    %1865 = vmatprep.subr.mxu0 0.0
    %1866 = vmatpush1.msra.mxu0 %v1821
    %1867 = vmatprep.subr.mxu0 0.0
    %1868 = vmatpush1.msra.mxu0 %v1820
    %1869 = vmatprep.subr.mxu0 0.0
    %1870 = vmatpush1.msra.mxu0 %v1819
    %1871 = vmatprep.subr.mxu0 0.0
    %1872 = vmatpush1.msra.mxu0 %v1818
    %1873 = vmatprep.subr.mxu0 0.0
    %1874 = vmatpush2.msra.mxu0 0.0
    %1875 = vmatprep.subr.mxu0 0.0
    %1876 = vmatpush2.msra.mxu0 0.0
    %1877 = vmatprep.subr.mxu0 0.0
    %1878 = vmatpush2.msra.mxu0 0.0
    %1879 = vmatprep.subr.mxu0 0.0
    %1880 = vmatpush2.msra.mxu0 0.0
    %1881 = vmatprep.subr.mxu0 0.0
    %1882 = vmatpush2.msra.mxu0 0.0
    %1883 = vmatprep.subr.mxu0 0.0
    %1884 = vmatpush2.msra.mxu0 0.0
    %1885 = vmatprep.subr.mxu0 0.0
    %1886 = vmatpush2.msra.mxu0 0.0
    %1887 = vmatprep.subr.mxu0 0.0
    %1888 = vmatpush2.msra.mxu0 0.0
    %1889 = vmatprep.subr.mxu0 0.0
    %1890 = vmatpush2.msra.mxu0 0.0
    %1891 = vmatprep.subr.mxu0 0.0
    %1892 = vmatpush2.msra.mxu0 0.0
    %1893 = vmatprep.subr.mxu0 0.0
    %1894 = vmatpush2.msra.mxu0 0.0
    %1895 = vmatprep.subr.mxu0 0.0
    %1896 = vmatpush2.msra.mxu0 0.0
    %1897 = vmatprep.subr.mxu0 0.0
    %1898 = vmatpush2.msra.mxu0 0.0
    %1899 = vmatprep.subr.mxu0 0.0
    %1900 = vmatpush2.msra.mxu0 0.0
    %1901 = vmatprep.subr.mxu0 0.0
    %1902 = vmatpush2.msra.mxu0 0.0
    %1903 = vmatprep.subr.mxu0 0.0
    %1904 = vmatpush2.msra.mxu0 0.0
    %1905 = vmatprep.mubr.f32.mxu0 0.0
    %1906 = vmatmul.mubr.f32.gmra.mxu0 %v1817
    %v1907 = vpop.f32.mrf.mxu0
    %v1908 = vadd.f32 %v1839, %v1907
    %v1909 = vpop.f32.mrf.mxu0
    %1910 = vdwg.mxu0
    %1911 = vst [vmem:[%s11] sm:$0xff] %v1908
    // Predicated region
    $region66: #{lan_encoder_forward.1} parent=1 // pred_check
      _
    $region67: #{lan_encoder_forward.1} parent=1 // pred_check_branch
      %1913 = sbr.rel (0) target = $region69
    $region68: #{lan_encoder_forward.1} parent=1 // pred_region
      _
    $region69: #{lan_encoder_forward.1} parent=1 // pred_fallthru
      _
    // Predicated region
    $region70: #{lan_encoder_forward.1} parent=1 // pred_check
      _
    $region71: #{lan_encoder_forward.1} parent=1 // pred_check_branch
      %1915 = sbr.rel (0) target = $region73
    $region72: #{lan_encoder_forward.1} parent=1 // pred_region
      _
    $region73: #{lan_encoder_forward.1} parent=1 // pred_fallthru
      _
    %1916 = vsyncpa [#allocation3], 1
    %1917 = vsyncpa [#allocation5], 1
    %1918 = vsyncpa [#allocation8], 1

</llo_original>
